<compile_context>
chip_gen: v7x
topology: tpu7x:2x2x1
jax: 0.10.0
libtpu: 0.0.40
codegen_flags: <defaults>
</compile_context>

<pallas_src>
import numpy as np
import jax
import jax.numpy as jnp
from jax.experimental import pallas as pl
from jax.experimental.pallas import tpu as pltpu

LEAKY_SLOPE = 0.01                     # nn.LeakyReLU default negative_slope
LN10_OVER_10 = float(np.log(10.0) / 10.0)


# --------------------------------------------------------------------------
# TripletFeatures index set (static Python, mirrors features.get_index()).
# --------------------------------------------------------------------------
def triplet_index(M, rho, index_type="reduce-1"):
    L = M // 2
    idx = []
    for m in range(-L, L + 1):
        for n in range(-L, L + 1):
            ok = (abs(m * n) <= rho * L) and (abs(m + n) <= L)
            if index_type == "full":
                pass
            elif index_type == "reduce-1":
                ok = ok and (n >= m)
            else:
                # TODO(synk): 'reduce-2' index pruning of TripletFeatures not reproduced here.
                raise NotImplementedError(index_type)
            if ok:
                idx.append((m, n))
    return idx


# --------------------------------------------------------------------------
# Pallas kernel: in-kernel triplet gather (one-hot matmul) -> triplet features
# -> fused complex MLP -> residual + power scaling, all batch-on-lanes.
# --------------------------------------------------------------------------
def eqpbcnn_kernel(x_ref, gt_ref, w1a_ref, w1b_ref, w2_ref, w3_ref,
                   pdb_ref, out_ref):
    nmodes = out_ref.shape[0]
    hp = w1a_ref.shape[2]          # padded feature count (multiple of 8)
    c = x_ref.shape[1] // 2        # center tap

    gt = gt_ref[...]               # [3*Hp, M] one-hot gather matrix (G^T)

    # P = 10 ** (P_dBm / 10) / Nmodes, kept as a [1, tb] row (batch on lanes).
    p = jnp.exp(pdb_ref[...] * LN10_OVER_10) * (1.0 / nmodes)

    sr = None                      # running cross-pol sum (shared by modes)
    si = None
    em_r, em_i, xc = [], [], []
    for i in range(nmodes):
        xr = x_ref[2 * i]          # [M, tb]  real plane of mode i
        xi = x_ref[2 * i + 1]      # [M, tb]  imag plane of mode i
        # residual rows (center tap), no extra input stream needed
        xc.append((xr[c:c + 1, :], xi[c:c + 1, :]))        # each [1, tb]

        # in-kernel gather: [En; Emn; Em] = G^T @ x        -> [3*Hp, tb]
        fr = jnp.dot(gt, xr, preferred_element_type=jnp.float32)
        fi = jnp.dot(gt, xi, preferred_element_type=jnp.float32)
        enr, emnr = fr[:hp], fr[hp:2 * hp]
        eni, emni = fi[:hp], fi[hp:2 * hp]
        em_r.append(fr[2 * hp:])
        em_i.append(fi[2 * hp:])

        # A_i = E[k+n, i] * conj(E[k+m+n, i]); accumulate cross-pol sum here
        ar = enr * emnr + eni * emni
        ai = eni * emnr - enr * emni
        sr = ar if sr is None else sr + ar
        si = ai if si is None else si + ai

    for i in range(nmodes):
        # triplet features F_i = S * E[k+m, i]             [Hp, tb]
        fr = sr * em_r[i] - si * em_i[i]
        fi = sr * em_i[i] + si * em_r[i]

        # complex MLP on stacked columns [zr; zi]; layer 1 avoids the concat
        z = (jnp.dot(w1a_ref[i], fr, preferred_element_type=jnp.float32)
             + jnp.dot(w1b_ref[i], fi, preferred_element_type=jnp.float32))
        z = jnp.where(z > 0, z, LEAKY_SLOPE * z)           # CLeakyReLU
        z = jnp.dot(w2_ref[i], z, preferred_element_type=jnp.float32)
        z = jnp.where(z > 0, z, LEAKY_SLOPE * z)
        z = jnp.dot(w3_ref[i], z, preferred_element_type=jnp.float32)  # [2, tb]

        res = jnp.concatenate([xc[i][0], xc[i][1]], axis=0)            # [2, tb]
        out_ref[i] = res + z * p                                        # lane-dense write


# --------------------------------------------------------------------------
# Wrapper: layout glue (planes, fused weights, BlockSpecs, tiling).
# --------------------------------------------------------------------------
def eqpbcnn_forward(x, task_info, weights, index, *, pol_num, tb=None):
    """
    x:         [B, M, Nmodes] complex64
    task_info: [B, 4] float32       ([P(dBm), Fi, Fs, Nch])
    weights:   list (per polarization) of 3 layers [(Wr, Wi)], Wr/Wi are [out, in]
    returns:   [B, Nmodes] complex64
    """
    B, M, Nmodes = x.shape
    assert Nmodes in (1, 2)
    if Nmodes == 1 and pol_num == 2:
        raise ValueError("Nmodes=1 and pol_num=2 is not a good choice, set pol_share=True.")
    hdim = len(index)
    assert weights[0][0][0].shape[1] == hdim
    h0 = weights[0][0][0].shape[0]
    h1 = weights[0][1][0].shape[0]
    c = M // 2

    # feature padding only needs sublane (8) granularity with batch on lanes
    Hp = ((hdim + 7) // 8) * 8

    # static one-hot gather matrix G^T, packed [Gn; Gmn; Gm] -> [3*Hp, M]
    gT_np = np.zeros((3 * Hp, M), np.float32)
    for h, (m, n) in enumerate(index):
        gT_np[h, c + n] = 1.0
        gT_np[Hp + h, c + m + n] = 1.0
        gT_np[2 * Hp + h, c + m] = 1.0
    gT = jnp.asarray(gT_np)

    # signal planes, batch on lanes: [2*Nmodes, M, B] (re/im interleaved per mode)
    xt = jnp.transpose(x, (2, 1, 0))                          # [Nmodes, M, B]
    xp = jnp.stack([jnp.real(xt), jnp.imag(xt)], axis=1)      # [Nmodes, 2, M, B]
    xp = xp.reshape(2 * Nmodes, M, B).astype(jnp.float32)

    # Fused complex-linear weights (column form):
    #   [zr_out; zi_out] = [[Wr, -Wi], [Wi, Wr]] @ [zr; zi]
    # Layer 1 is split into the fr / fi halves so no [fr; fi] concat is needed.
    def pack(i):
        (wr1, wi1), (wr2, wi2), (wr3, wi3) = weights[min(i, pol_num - 1)]
        padw = ((0, 0), (0, Hp - hdim))
        wr1p = jnp.pad(wr1.astype(jnp.float32), padw)
        wi1p = jnp.pad(wi1.astype(jnp.float32), padw)
        w1a = jnp.concatenate([wr1p, wi1p], axis=0)                     # [2*h0, Hp]
        w1b = jnp.concatenate([-wi1p, wr1p], axis=0)                    # [2*h0, Hp]
        w2 = jnp.block([[wr2, -wi2], [wi2, wr2]]).astype(jnp.float32)   # [2*h1, 2*h0]
        w3 = jnp.block([[wr3, -wi3], [wi3, wr3]]).astype(jnp.float32)   # [2, 2*h1]
        return w1a, w1b, w2, w3

    packed = [pack(i) for i in range(Nmodes)]
    w1a = jnp.stack([pk[0] for pk in packed])
    w1b = jnp.stack([pk[1] for pk in packed])
    w2 = jnp.stack([pk[2] for pk in packed])
    w3 = jnp.stack([pk[3] for pk in packed])

    pdb = task_info[:, 0].astype(jnp.float32).reshape(1, B)             # [1, B]

    # batch tile: lane-dense (multiple of 128), as large as possible, and
    # >= 2 grid steps when possible (feeds both v7x TensorCores).
    if tb is None:
        tb = B
        for cand in (2048, 1024, 512, 384, 256, 128):
            if B % cand == 0 and B // cand >= 2:
                tb = cand
                break
    assert B % tb == 0
    assert tb == B or tb % 128 == 0, "tb must be a multiple of 128 when tiling the batch"
    grid = (B // tb,)

    x_spec = pl.BlockSpec((2 * Nmodes, M, tb), lambda b: (0, 0, b))
    gt_spec = pl.BlockSpec(gT.shape, lambda b: (0, 0))

    def w_spec(w):
        return pl.BlockSpec(w.shape, lambda b: (0, 0, 0))

    pdb_spec = pl.BlockSpec((1, tb), lambda b: (0, b))
    out_spec = pl.BlockSpec((Nmodes, 2, tb), lambda b: (0, 0, b))

    # <= 48 MiB keeps v7x (64 MiB VMEM) safe; v5e/v6e have ample headroom.
    vmem_limit = 32 * 1024 * 1024 if tb <= 512 else 48 * 1024 * 1024

    flops = B * Nmodes * (2 * 2 * (3 * Hp) * M           # gather matmuls (re+im)
                          + 16 * Hp                      # VPU triplet products
                          + 4 * (2 * h0) * Hp            # layer 1 (two matmuls)
                          + 2 * (2 * h1) * (2 * h0)      # layer 2
                          + 2 * 2 * (2 * h1))            # layer 3
    bytes_accessed = 4 * (xp.size + gT.size + w1a.size + w1b.size + w2.size
                          + w3.size + pdb.size + Nmodes * 2 * B)
    cost = pl.CostEstimate(flops=int(flops), transcendentals=int(B),
                           bytes_accessed=int(bytes_accessed))

    out = pl.pallas_call(
        eqpbcnn_kernel,
        grid=grid,
        in_specs=[x_spec, gt_spec, w_spec(w1a), w_spec(w1b), w_spec(w2),
                  w_spec(w3), pdb_spec],
        out_specs=out_spec,
        out_shape=jax.ShapeDtypeStruct((Nmodes, 2, B), jnp.float32),
        compiler_params=pltpu.CompilerParams(
            dimension_semantics=("parallel",),
            vmem_limit_bytes=vmem_limit),
        cost_estimate=cost,
    )(xp, gT, w1a, w1b, w2, w3, pdb)

    out_c = (out[:, 0, :] + 1j * out[:, 1, :]).astype(jnp.complex64)    # [Nmodes, B]
    return out_c.T                                                       # [B, Nmodes]


# --------------------------------------------------------------------------
# Deterministic parameter init (shapes from EqPBCNN.__init__)
# --------------------------------------------------------------------------
def init_params(key, hdim, hidden_sizes, pol_num):
    dims = [(hidden_sizes[0], hdim),
            (hidden_sizes[1], hidden_sizes[0]),
            (1, hidden_sizes[1])]
    params = []
    for _ in range(pol_num):
        layers = []
        for li, (fo, fi) in enumerate(dims):
            key, k1, k2 = jax.random.split(key, 3)
            if li == len(dims) - 1:
                wr = 1e-4 * jax.random.normal(k1, (fo, fi), jnp.float32)
                wi = 1e-4 * jax.random.normal(k2, (fo, fi), jnp.float32)
            else:
                bound = 1.0 / np.sqrt(fi)
                wr = jax.random.uniform(k1, (fo, fi), jnp.float32, -bound, bound)
                wi = jax.random.uniform(k2, (fo, fi), jnp.float32, -bound, bound)
            layers.append((wr, wi))
        params.append(layers)
    return params


# --------------------------------------------------------------------------
# Pure-JAX reference of the torch forward (for verification)
# --------------------------------------------------------------------------
def reference_forward(x, task_info, weights, index, *, pol_num):
    B, M, Nmodes = x.shape
    p_c = M // 2
    m_arr = np.array([m for m, _ in index])
    n_arr = np.array([n for _, n in index])
    P = 10.0 ** (task_info[:, 0] / 10.0) / Nmodes                 # get_power
    En = x[:, p_c + n_arr, :]
    Emn = x[:, p_c + m_arr + n_arr, :]
    Em = x[:, p_c + m_arr, :]
    A = En * jnp.conj(Emn)                                        # [B, hdim, Nmodes]
    S = A if Nmodes == 1 else A + A[..., ::-1]
    F = S * Em                                                    # [B, hdim, Nmodes]
    Es = []
    for i in range(Nmodes):
        z = F[:, :, i]
        layers = weights[min(i, pol_num - 1)]
        for li, (wr, wi) in enumerate(layers):
            zr = z.real @ wr.T - z.imag @ wi.T
            zi = z.imag @ wr.T + z.real @ wi.T
            if li < len(layers) - 1:
                zr = jnp.where(zr > 0, zr, LEAKY_SLOPE * zr)
                zi = jnp.where(zi > 0, zi, LEAKY_SLOPE * zi)
            z = (zr + 1j * zi).astype(jnp.complex64)
        Es.append(z)
    E = jnp.concatenate(Es, axis=-1)                              # [B, Nmodes]
    return x[:, p_c, :] + E * P[:, None]


def _make_inputs(key, B, M, Nmodes):
    kx, ki, kt = jax.random.split(key, 3)
    xr = jax.random.normal(kx, (B, M, Nmodes), jnp.float32)
    xi = jax.random.normal(ki, (B, M, Nmodes), jnp.float32)
    x = (xr + 1j * xi).astype(jnp.complex64)
    task_info = jnp.concatenate(
        [jax.random.uniform(kt, (B, 1), jnp.float32, -2.0, 2.0),
         jnp.zeros((B, 3), jnp.float32)], axis=1)                 # [B, 4]
    return x, task_info


def _check(x, task_info, params, index, pol_num):
    out = eqpbcnn_forward(x, task_info, params, index, pol_num=pol_num)
    out = jax.block_until_ready(out)
    ref = reference_forward(x, task_info, params, index, pol_num=pol_num)
    np.testing.assert_allclose(np.asarray(out), np.asarray(ref),
                               rtol=1e-3, atol=2e-4)


if __name__ == "__main__":
    M, rho = 9, 1.0
    hidden_sizes = [2, 10]
    index = triplet_index(M, rho, "reduce-1")
    hdim = len(index)

    key = jax.random.PRNGKey(0)
    k_in1, k_p1, k_in2, k_p2, k_in3, k_p3 = jax.random.split(key, 6)

    # --- config 1: dual-pol, per-pol filters (pol_share=False), single step --
    x, ti = _make_inputs(k_in1, 4, M, 2)
    params = init_params(k_p1, hdim, hidden_sizes, pol_num=2)
    _check(x, ti, params, index, pol_num=2)

    # --- config 2: single-pol, shared filter (pol_share=True) ----------------
    x2, ti2 = _make_inputs(k_in2, 16, M, 1)
    params2 = init_params(k_p2, hdim, hidden_sizes, pol_num=1)
    _check(x2, ti2, params2, index, pol_num=1)

    # --- config 3: dual-pol, shared filter, tiled batch (2 grid steps) -------
    x3, ti3 = _make_inputs(k_in3, 256, M, 2)
    params3 = init_params(k_p3, hdim, hidden_sizes, pol_num=1)
    _check(x3, ti3, params3, index, pol_num=1)

    print("KERNEL_OK")
</pallas_src>

<mosaic_0001>
module attributes {stable_mosaic.version = 11 : i64} {
  func.func @eqpbcnn_kernel(%arg0: i32, %arg1: memref<4x9x4xf32, #tpu.memory_space<vmem>>, %arg2: memref<96x9xf32, #tpu.memory_space<vmem>>, %arg3: memref<2x4x32xf32, #tpu.memory_space<vmem>>, %arg4: memref<2x4x32xf32, #tpu.memory_space<vmem>>, %arg5: memref<2x20x4xf32, #tpu.memory_space<vmem>>, %arg6: memref<2x2x20xf32, #tpu.memory_space<vmem>>, %arg7: memref<1x4xf32, #tpu.memory_space<vmem>>, %arg8: memref<2x2x4xf32, #tpu.memory_space<vmem>>) attributes {dimension_semantics = [#tpu.dimension_semantics<parallel>], iteration_bounds = array<i64: 1>, scalar_prefetch = 0 : i64, scratch_operands = 0 : i64, tpu.core_type = #tpu.core_type<tc>, window_params = [{transform_indices = @transform_0, window_bounds = array<i64: 4, 9, 4>}, {pipeline_mode = #tpu.pipeline_mode<synchronous>, transform_indices = @transform_1, window_bounds = array<i64: 96, 9>}, {pipeline_mode = #tpu.pipeline_mode<synchronous>, transform_indices = @transform_2, window_bounds = array<i64: 2, 4, 32>}, {pipeline_mode = #tpu.pipeline_mode<synchronous>, transform_indices = @transform_3, window_bounds = array<i64: 2, 4, 32>}, {pipeline_mode = #tpu.pipeline_mode<synchronous>, transform_indices = @transform_4, window_bounds = array<i64: 2, 20, 4>}, {pipeline_mode = #tpu.pipeline_mode<synchronous>, transform_indices = @transform_5, window_bounds = array<i64: 2, 2, 20>}, {transform_indices = @transform_6, window_bounds = array<i64: 1, 4>}, {transform_indices = @transform_7, window_bounds = array<i64: 2, 2, 4>}]} {
    %c0 = arith.constant 0 : index
    %c0_0 = arith.constant 0 : index
    %0 = vector.load %arg2[%c0, %c0_0] : memref<96x9xf32, #tpu.memory_space<vmem>>, vector<96x9xf32>
    %c0_1 = arith.constant 0 : index
    %c0_2 = arith.constant 0 : index
    %1 = vector.load %arg7[%c0_1, %c0_2] : memref<1x4xf32, #tpu.memory_space<vmem>>, vector<1x4xf32>
    %cst = arith.constant 0.23025851 : f32
    %2 = vector.broadcast %cst : f32 to vector<1x4xf32>
    %3 = arith.mulf %1, %2 : vector<1x4xf32>
    %4 = math.exp %3 : vector<1x4xf32>
    %cst_3 = arith.constant 5.000000e-01 : f32
    %5 = vector.broadcast %cst_3 : f32 to vector<1x4xf32>
    %6 = arith.mulf %4, %5 : vector<1x4xf32>
    %c0_4 = arith.constant 0 : index
    %c0_5 = arith.constant 0 : index
    %c0_6 = arith.constant 0 : index
    %7 = vector.load %arg1[%c0_4, %c0_5, %c0_6] : memref<4x9x4xf32, #tpu.memory_space<vmem>>, vector<1x9x4xf32>
    %8 = vector.shape_cast %7 : vector<1x9x4xf32> to vector<9x4xf32>
    %c1 = arith.constant 1 : index
    %c0_7 = arith.constant 0 : index
    %c0_8 = arith.constant 0 : index
    %9 = vector.load %arg1[%c1, %c0_7, %c0_8] : memref<4x9x4xf32, #tpu.memory_space<vmem>>, vector<1x9x4xf32>
    %10 = vector.shape_cast %9 : vector<1x9x4xf32> to vector<9x4xf32>
    %11 = vector.extract_strided_slice %8 {offsets = [4, 0], sizes = [1, 4], strides = [1, 1]} : vector<9x4xf32> to vector<1x4xf32>
    %12 = vector.extract_strided_slice %10 {offsets = [4, 0], sizes = [1, 4], strides = [1, 1]} : vector<9x4xf32> to vector<1x4xf32>
    %cst_9 = arith.constant dense<0.000000e+00> : vector<96x4xf32>
    %13 = tpu.matmul %0, %8, %cst_9 {dimension_numbers = #tpu.dot_dimension_numbers<[1], [0], [0], [1], [0, 0, 1, 1], [], []>} : vector<96x9xf32>, vector<9x4xf32>, vector<96x4xf32> -> vector<96x4xf32>
    %cst_10 = arith.constant dense<0.000000e+00> : vector<96x4xf32>
    %14 = tpu.matmul %0, %10, %cst_10 {dimension_numbers = #tpu.dot_dimension_numbers<[1], [0], [0], [1], [0, 0, 1, 1], [], []>} : vector<96x9xf32>, vector<9x4xf32>, vector<96x4xf32> -> vector<96x4xf32>
    %15 = vector.extract_strided_slice %13 {offsets = [0, 0], sizes = [32, 4], strides = [1, 1]} : vector<96x4xf32> to vector<32x4xf32>
    %16 = vector.extract_strided_slice %13 {offsets = [32, 0], sizes = [32, 4], strides = [1, 1]} : vector<96x4xf32> to vector<32x4xf32>
    %17 = vector.extract_strided_slice %14 {offsets = [0, 0], sizes = [32, 4], strides = [1, 1]} : vector<96x4xf32> to vector<32x4xf32>
    %18 = vector.extract_strided_slice %14 {offsets = [32, 0], sizes = [32, 4], strides = [1, 1]} : vector<96x4xf32> to vector<32x4xf32>
    %19 = vector.extract_strided_slice %13 {offsets = [64, 0], sizes = [32, 4], strides = [1, 1]} : vector<96x4xf32> to vector<32x4xf32>
    %20 = vector.extract_strided_slice %14 {offsets = [64, 0], sizes = [32, 4], strides = [1, 1]} : vector<96x4xf32> to vector<32x4xf32>
    %21 = arith.mulf %15, %16 : vector<32x4xf32>
    %22 = arith.mulf %17, %18 : vector<32x4xf32>
    %23 = arith.addf %21, %22 : vector<32x4xf32>
    %24 = arith.mulf %17, %16 : vector<32x4xf32>
    %25 = arith.mulf %15, %18 : vector<32x4xf32>
    %26 = arith.subf %24, %25 : vector<32x4xf32>
    %c2 = arith.constant 2 : index
    %c0_11 = arith.constant 0 : index
    %c0_12 = arith.constant 0 : index
    %27 = vector.load %arg1[%c2, %c0_11, %c0_12] : memref<4x9x4xf32, #tpu.memory_space<vmem>>, vector<1x9x4xf32>
    %28 = vector.shape_cast %27 : vector<1x9x4xf32> to vector<9x4xf32>
    %c3 = arith.constant 3 : index
    %c0_13 = arith.constant 0 : index
    %c0_14 = arith.constant 0 : index
    %29 = vector.load %arg1[%c3, %c0_13, %c0_14] : memref<4x9x4xf32, #tpu.memory_space<vmem>>, vector<1x9x4xf32>
    %30 = vector.shape_cast %29 : vector<1x9x4xf32> to vector<9x4xf32>
    %31 = vector.extract_strided_slice %28 {offsets = [4, 0], sizes = [1, 4], strides = [1, 1]} : vector<9x4xf32> to vector<1x4xf32>
    %32 = vector.extract_strided_slice %30 {offsets = [4, 0], sizes = [1, 4], strides = [1, 1]} : vector<9x4xf32> to vector<1x4xf32>
    %cst_15 = arith.constant dense<0.000000e+00> : vector<96x4xf32>
    %33 = tpu.matmul %0, %28, %cst_15 {dimension_numbers = #tpu.dot_dimension_numbers<[1], [0], [0], [1], [0, 0, 1, 1], [], []>} : vector<96x9xf32>, vector<9x4xf32>, vector<96x4xf32> -> vector<96x4xf32>
    %cst_16 = arith.constant dense<0.000000e+00> : vector<96x4xf32>
    %34 = tpu.matmul %0, %30, %cst_16 {dimension_numbers = #tpu.dot_dimension_numbers<[1], [0], [0], [1], [0, 0, 1, 1], [], []>} : vector<96x9xf32>, vector<9x4xf32>, vector<96x4xf32> -> vector<96x4xf32>
    %35 = vector.extract_strided_slice %33 {offsets = [0, 0], sizes = [32, 4], strides = [1, 1]} : vector<96x4xf32> to vector<32x4xf32>
    %36 = vector.extract_strided_slice %33 {offsets = [32, 0], sizes = [32, 4], strides = [1, 1]} : vector<96x4xf32> to vector<32x4xf32>
    %37 = vector.extract_strided_slice %34 {offsets = [0, 0], sizes = [32, 4], strides = [1, 1]} : vector<96x4xf32> to vector<32x4xf32>
    %38 = vector.extract_strided_slice %34 {offsets = [32, 0], sizes = [32, 4], strides = [1, 1]} : vector<96x4xf32> to vector<32x4xf32>
    %39 = vector.extract_strided_slice %33 {offsets = [64, 0], sizes = [32, 4], strides = [1, 1]} : vector<96x4xf32> to vector<32x4xf32>
    %40 = vector.extract_strided_slice %34 {offsets = [64, 0], sizes = [32, 4], strides = [1, 1]} : vector<96x4xf32> to vector<32x4xf32>
    %41 = arith.mulf %35, %36 : vector<32x4xf32>
    %42 = arith.mulf %37, %38 : vector<32x4xf32>
    %43 = arith.addf %41, %42 : vector<32x4xf32>
    %44 = arith.mulf %37, %36 : vector<32x4xf32>
    %45 = arith.mulf %35, %38 : vector<32x4xf32>
    %46 = arith.subf %44, %45 : vector<32x4xf32>
    %47 = arith.addf %23, %43 : vector<32x4xf32>
    %48 = arith.addf %26, %46 : vector<32x4xf32>
    %49 = arith.mulf %47, %19 : vector<32x4xf32>
    %50 = arith.mulf %48, %20 : vector<32x4xf32>
    %51 = arith.subf %49, %50 : vector<32x4xf32>
    %52 = arith.mulf %47, %20 : vector<32x4xf32>
    %53 = arith.mulf %48, %19 : vector<32x4xf32>
    %54 = arith.addf %52, %53 : vector<32x4xf32>
    %c0_17 = arith.constant 0 : index
    %c0_18 = arith.constant 0 : index
    %c0_19 = arith.constant 0 : index
    %55 = vector.load %arg3[%c0_17, %c0_18, %c0_19] : memref<2x4x32xf32, #tpu.memory_space<vmem>>, vector<1x4x32xf32>
    %56 = vector.shape_cast %55 : vector<1x4x32xf32> to vector<4x32xf32>
    %cst_20 = arith.constant dense<0.000000e+00> : vector<4x4xf32>
    %57 = tpu.matmul %56, %51, %cst_20 {dimension_numbers = #tpu.dot_dimension_numbers<[1], [0], [0], [1], [0, 0, 1, 1], [], []>} : vector<4x32xf32>, vector<32x4xf32>, vector<4x4xf32> -> vector<4x4xf32>
    %c0_21 = arith.constant 0 : index
    %c0_22 = arith.constant 0 : index
    %c0_23 = arith.constant 0 : index
    %58 = vector.load %arg4[%c0_21, %c0_22, %c0_23] : memref<2x4x32xf32, #tpu.memory_space<vmem>>, vector<1x4x32xf32>
    %59 = vector.shape_cast %58 : vector<1x4x32xf32> to vector<4x32xf32>
    %cst_24 = arith.constant dense<0.000000e+00> : vector<4x4xf32>
    %60 = tpu.matmul %59, %54, %cst_24 {dimension_numbers = #tpu.dot_dimension_numbers<[1], [0], [0], [1], [0, 0, 1, 1], [], []>} : vector<4x32xf32>, vector<32x4xf32>, vector<4x4xf32> -> vector<4x4xf32>
    %61 = arith.addf %57, %60 : vector<4x4xf32>
    %cst_25 = arith.constant 0.000000e+00 : f32
    %62 = vector.broadcast %cst_25 : f32 to vector<4x4xf32>
    %63 = arith.cmpf ogt, %61, %62 : vector<4x4xf32>
    %cst_26 = arith.constant 0.00999999977 : f32
    %64 = vector.broadcast %cst_26 : f32 to vector<4x4xf32>
    %65 = arith.mulf %64, %61 : vector<4x4xf32>
    %66 = arith.select %63, %61, %65 : vector<4x4xi1>, vector<4x4xf32>
    %c0_27 = arith.constant 0 : index
    %c0_28 = arith.constant 0 : index
    %c0_29 = arith.constant 0 : index
    %67 = vector.load %arg5[%c0_27, %c0_28, %c0_29] : memref<2x20x4xf32, #tpu.memory_space<vmem>>, vector<1x20x4xf32>
    %68 = vector.shape_cast %67 : vector<1x20x4xf32> to vector<20x4xf32>
    %cst_30 = arith.constant dense<0.000000e+00> : vector<20x4xf32>
    %69 = tpu.matmul %68, %66, %cst_30 {dimension_numbers = #tpu.dot_dimension_numbers<[1], [0], [0], [1], [0, 0, 1, 1], [], []>} : vector<20x4xf32>, vector<4x4xf32>, vector<20x4xf32> -> vector<20x4xf32>
    %cst_31 = arith.constant 0.000000e+00 : f32
    %70 = vector.broadcast %cst_31 : f32 to vector<20x4xf32>
    %71 = arith.cmpf ogt, %69, %70 : vector<20x4xf32>
    %cst_32 = arith.constant 0.00999999977 : f32
    %72 = vector.broadcast %cst_32 : f32 to vector<20x4xf32>
    %73 = arith.mulf %72, %69 : vector<20x4xf32>
    %74 = arith.select %71, %69, %73 : vector<20x4xi1>, vector<20x4xf32>
    %c0_33 = arith.constant 0 : index
    %c0_34 = arith.constant 0 : index
    %c0_35 = arith.constant 0 : index
    %75 = vector.load %arg6[%c0_33, %c0_34, %c0_35] : memref<2x2x20xf32, #tpu.memory_space<vmem>>, vector<1x2x20xf32>
    %76 = vector.shape_cast %75 : vector<1x2x20xf32> to vector<2x20xf32>
    %cst_36 = arith.constant dense<0.000000e+00> : vector<2x4xf32>
    %77 = tpu.matmul %76, %74, %cst_36 {dimension_numbers = #tpu.dot_dimension_numbers<[1], [0], [0], [1], [0, 0, 1, 1], [], []>} : vector<2x20xf32>, vector<20x4xf32>, vector<2x4xf32> -> vector<2x4xf32>
    %78 = tpu.concatenate %11, %12 in 0 : vector<1x4xf32>, vector<1x4xf32> -> vector<2x4xf32>
    %79 = vector.broadcast %6 : vector<1x4xf32> to vector<2x4xf32>
    %80 = arith.mulf %77, %79 : vector<2x4xf32>
    %81 = arith.addf %78, %80 : vector<2x4xf32>
    %c0_37 = arith.constant 0 : index
    %c0_38 = arith.constant 0 : index
    %c0_39 = arith.constant 0 : index
    %82 = vector.load %arg8[%c0_37, %c0_38, %c0_39] : memref<2x2x4xf32, #tpu.memory_space<vmem>>, vector<1x2x4xf32>
    %83 = vector.shape_cast %82 : vector<1x2x4xf32> to vector<2x4xf32>
    %84 = vector.shape_cast %81 : vector<2x4xf32> to vector<1x2x4xf32>
    tpu.vector_store %arg8[%c0_37, %c0_38, %c0_39], %84 {strides = array<i32>} : memref<2x2x4xf32, #tpu.memory_space<vmem>>, vector<1x2x4xf32>,
    %85 = arith.mulf %47, %39 : vector<32x4xf32>
    %86 = arith.mulf %48, %40 : vector<32x4xf32>
    %87 = arith.subf %85, %86 : vector<32x4xf32>
    %88 = arith.mulf %47, %40 : vector<32x4xf32>
    %89 = arith.mulf %48, %39 : vector<32x4xf32>
    %90 = arith.addf %88, %89 : vector<32x4xf32>
    %c1_40 = arith.constant 1 : index
    %c0_41 = arith.constant 0 : index
    %c0_42 = arith.constant 0 : index
    %91 = vector.load %arg3[%c1_40, %c0_41, %c0_42] : memref<2x4x32xf32, #tpu.memory_space<vmem>>, vector<1x4x32xf32>
    %92 = vector.shape_cast %91 : vector<1x4x32xf32> to vector<4x32xf32>
    %cst_43 = arith.constant dense<0.000000e+00> : vector<4x4xf32>
    %93 = tpu.matmul %92, %87, %cst_43 {dimension_numbers = #tpu.dot_dimension_numbers<[1], [0], [0], [1], [0, 0, 1, 1], [], []>} : vector<4x32xf32>, vector<32x4xf32>, vector<4x4xf32> -> vector<4x4xf32>
    %c1_44 = arith.constant 1 : index
    %c0_45 = arith.constant 0 : index
    %c0_46 = arith.constant 0 : index
    %94 = vector.load %arg4[%c1_44, %c0_45, %c0_46] : memref<2x4x32xf32, #tpu.memory_space<vmem>>, vector<1x4x32xf32>
    %95 = vector.shape_cast %94 : vector<1x4x32xf32> to vector<4x32xf32>
    %cst_47 = arith.constant dense<0.000000e+00> : vector<4x4xf32>
    %96 = tpu.matmul %95, %90, %cst_47 {dimension_numbers = #tpu.dot_dimension_numbers<[1], [0], [0], [1], [0, 0, 1, 1], [], []>} : vector<4x32xf32>, vector<32x4xf32>, vector<4x4xf32> -> vector<4x4xf32>
    %97 = arith.addf %93, %96 : vector<4x4xf32>
    %cst_48 = arith.constant 0.000000e+00 : f32
    %98 = vector.broadcast %cst_48 : f32 to vector<4x4xf32>
    %99 = arith.cmpf ogt, %97, %98 : vector<4x4xf32>
    %cst_49 = arith.constant 0.00999999977 : f32
    %100 = vector.broadcast %cst_49 : f32 to vector<4x4xf32>
    %101 = arith.mulf %100, %97 : vector<4x4xf32>
    %102 = arith.select %99, %97, %101 : vector<4x4xi1>, vector<4x4xf32>
    %c1_50 = arith.constant 1 : index
    %c0_51 = arith.constant 0 : index
    %c0_52 = arith.constant 0 : index
    %103 = vector.load %arg5[%c1_50, %c0_51, %c0_52] : memref<2x20x4xf32, #tpu.memory_space<vmem>>, vector<1x20x4xf32>
    %104 = vector.shape_cast %103 : vector<1x20x4xf32> to vector<20x4xf32>
    %cst_53 = arith.constant dense<0.000000e+00> : vector<20x4xf32>
    %105 = tpu.matmul %104, %102, %cst_53 {dimension_numbers = #tpu.dot_dimension_numbers<[1], [0], [0], [1], [0, 0, 1, 1], [], []>} : vector<20x4xf32>, vector<4x4xf32>, vector<20x4xf32> -> vector<20x4xf32>
    %cst_54 = arith.constant 0.000000e+00 : f32
    %106 = vector.broadcast %cst_54 : f32 to vector<20x4xf32>
    %107 = arith.cmpf ogt, %105, %106 : vector<20x4xf32>
    %cst_55 = arith.constant 0.00999999977 : f32
    %108 = vector.broadcast %cst_55 : f32 to vector<20x4xf32>
    %109 = arith.mulf %108, %105 : vector<20x4xf32>
    %110 = arith.select %107, %105, %109 : vector<20x4xi1>, vector<20x4xf32>
    %c1_56 = arith.constant 1 : index
    %c0_57 = arith.constant 0 : index
    %c0_58 = arith.constant 0 : index
    %111 = vector.load %arg6[%c1_56, %c0_57, %c0_58] : memref<2x2x20xf32, #tpu.memory_space<vmem>>, vector<1x2x20xf32>
    %112 = vector.shape_cast %111 : vector<1x2x20xf32> to vector<2x20xf32>
    %cst_59 = arith.constant dense<0.000000e+00> : vector<2x4xf32>
    %113 = tpu.matmul %112, %110, %cst_59 {dimension_numbers = #tpu.dot_dimension_numbers<[1], [0], [0], [1], [0, 0, 1, 1], [], []>} : vector<2x20xf32>, vector<20x4xf32>, vector<2x4xf32> -> vector<2x4xf32>
    %114 = tpu.concatenate %31, %32 in 0 : vector<1x4xf32>, vector<1x4xf32> -> vector<2x4xf32>
    %115 = vector.broadcast %6 : vector<1x4xf32> to vector<2x4xf32>
    %116 = arith.mulf %113, %115 : vector<2x4xf32>
    %117 = arith.addf %114, %116 : vector<2x4xf32>
    %c1_60 = arith.constant 1 : index
    %c0_61 = arith.constant 0 : index
    %c0_62 = arith.constant 0 : index
    %118 = vector.load %arg8[%c1_60, %c0_61, %c0_62] : memref<2x2x4xf32, #tpu.memory_space<vmem>>, vector<1x2x4xf32>
    %119 = vector.shape_cast %118 : vector<1x2x4xf32> to vector<2x4xf32>
    %120 = vector.shape_cast %117 : vector<2x4xf32> to vector<1x2x4xf32>
    tpu.vector_store %arg8[%c1_60, %c0_61, %c0_62], %120 {strides = array<i32>} : memref<2x2x4xf32, #tpu.memory_space<vmem>>, vector<1x2x4xf32>,
    return
  }
  func.func @transform_0(%arg0: i32) -> (i32, i32, i32) {
    %c0_i32 = arith.constant 0 : i32
    %c0_i32_0 = arith.constant 0 : i32
    %c0_i32_1 = arith.constant 0 : i32
    return %c0_i32, %c0_i32_0, %arg0 : i32, i32, i32
  }
  func.func @transform_1(%arg0: i32) -> (i32, i32) {
    %c0_i32 = arith.constant 0 : i32
    %c0_i32_0 = arith.constant 0 : i32
    %c0_i32_1 = arith.constant 0 : i32
    return %c0_i32, %c0_i32_0 : i32, i32
  }
  func.func @transform_2(%arg0: i32) -> (i32, i32, i32) {
    %c0_i32 = arith.constant 0 : i32
    %c0_i32_0 = arith.constant 0 : i32
    %c0_i32_1 = arith.constant 0 : i32
    %c0_i32_2 = arith.constant 0 : i32
    return %c0_i32, %c0_i32_0, %c0_i32_1 : i32, i32, i32
  }
  func.func @transform_3(%arg0: i32) -> (i32, i32, i32) {
    %c0_i32 = arith.constant 0 : i32
    %c0_i32_0 = arith.constant 0 : i32
    %c0_i32_1 = arith.constant 0 : i32
    %c0_i32_2 = arith.constant 0 : i32
    return %c0_i32, %c0_i32_0, %c0_i32_1 : i32, i32, i32
  }
  func.func @transform_4(%arg0: i32) -> (i32, i32, i32) {
    %c0_i32 = arith.constant 0 : i32
    %c0_i32_0 = arith.constant 0 : i32
    %c0_i32_1 = arith.constant 0 : i32
    %c0_i32_2 = arith.constant 0 : i32
    return %c0_i32, %c0_i32_0, %c0_i32_1 : i32, i32, i32
  }
  func.func @transform_5(%arg0: i32) -> (i32, i32, i32) {
    %c0_i32 = arith.constant 0 : i32
    %c0_i32_0 = arith.constant 0 : i32
    %c0_i32_1 = arith.constant 0 : i32
    %c0_i32_2 = arith.constant 0 : i32
    return %c0_i32, %c0_i32_0, %c0_i32_1 : i32, i32, i32
  }
  func.func @transform_6(%arg0: i32) -> (i32, i32) {
    %c0_i32 = arith.constant 0 : i32
    %c0_i32_0 = arith.constant 0 : i32
    return %c0_i32, %arg0 : i32, i32
  }
  func.func @transform_7(%arg0: i32) -> (i32, i32, i32) {
    %c0_i32 = arith.constant 0 : i32
    %c0_i32_0 = arith.constant 0 : i32
    %c0_i32_1 = arith.constant 0 : i32
    return %c0_i32, %c0_i32_0, %arg0 : i32, i32, i32
  }
}

</mosaic_0001>

<llo_original>
// kernel: tpu_custom_call.1
$region0: #{tpu_custom_call.1}
  #allocation0 [shape = 'u32[]', space=smem, size = 0x4, offset = 0x4, fixed_abs, tag = 'smem constant byte address 0x4 - core index']
  #allocation1 [shape = 'u32[144,128]{1,0:T(1,128)}', space=vmem, size = 0x12000, scoped, tag = 'internal scratch']
  %s0 = inlined_call_operand.vmem [shape: f32[4,9,4], index: 0, kind: input, shape index: {}]
  %s1 = inlined_call_operand.vmem [shape: f32[96,9], index: 1, kind: input, shape index: {}]
  %s2 = inlined_call_operand.vmem [shape: f32[2,4,32], index: 2, kind: input, shape index: {}]
  %s3 = inlined_call_operand.vmem [shape: f32[2,4,32], index: 3, kind: input, shape index: {}]
  %s4 = inlined_call_operand.vmem [shape: f32[2,20,4], index: 4, kind: input, shape index: {}]
  %s5 = inlined_call_operand.vmem [shape: f32[2,2,20], index: 5, kind: input, shape index: {}]
  %s6 = inlined_call_operand.vmem [shape: f32[1,4], index: 6, kind: input, shape index: {}]
  %s7 = inlined_call_operand.hbm [shape: f32[2,2,4], index: 7, kind: output, shape index: {}]
  %s8 = sld [smem:[#allocation0]]
  $region38: #{tpu_custom_call.1} parent=0
    _
  %s10 = ssub.s32 1, %s8
  %s11 = scalar_select 0, %s10, %s8
  $region1: #{tpu_custom_call.1} parent=0
    #allocation2 [shape = 'u8[2048]{0}', space=vmem, size = 0x800, scoped, tag = 'output window, operand 0, single buffered']
    #allocation3 [shape = 's32[1]{0}', space=sflag, size = 0x4, scoped, tag = 'scoped memory for tpu_custom_call.1']
    %12 = vsyncpa [#allocation3], 0
    // Predicated region
    $region2: #{tpu_custom_call.1} parent=1 // pred_check
      _
    $region3: #{tpu_custom_call.1} parent=1 // pred_check_branch
      %14 = sbr.rel (0) target = $region5
    $region4: #{tpu_custom_call.1} parent=1 // pred_region
      _
    $region5: #{tpu_custom_call.1} parent=1 // pred_fallthru
      _
    // Predicated region
    $region6: #{tpu_custom_call.1} parent=1 // pred_check
      _
    $region7: #{tpu_custom_call.1} parent=1 // pred_check_branch
      %16 = sbr.rel (0) target = $region9
    $region8: #{tpu_custom_call.1} parent=1 // pred_region
      _
    $region9: #{tpu_custom_call.1} parent=1 // pred_fallthru
      _
    // Predicated region
    $region10: #{tpu_custom_call.1} parent=1 // pred_check
      _
    $region11: #{tpu_custom_call.1} parent=1 // pred_check_branch
      %18 = sbr.rel (0) target = $region13
    $region12: #{tpu_custom_call.1} parent=1 // pred_region
      _
    $region13: #{tpu_custom_call.1} parent=1 // pred_fallthru
      _
    // Predicated region
    $region14: #{tpu_custom_call.1} parent=1 // pred_check
      _
    $region15: #{tpu_custom_call.1} parent=1 // pred_check_branch
      %20 = sbr.rel (0) target = $region17
    $region16: #{tpu_custom_call.1} parent=1 // pred_region
      _
    $region17: #{tpu_custom_call.1} parent=1 // pred_fallthru
      _
    // Predicated region
    $region18: #{tpu_custom_call.1} parent=1 // pred_check
      _
    $region19: #{tpu_custom_call.1} parent=1 // pred_check_branch
      %22 = sbr.rel (0) target = $region21
    $region20: #{tpu_custom_call.1} parent=1 // pred_region
      _
    $region21: #{tpu_custom_call.1} parent=1 // pred_fallthru
      _
    // Predicated region
    $region22: #{tpu_custom_call.1} parent=1 // pred_check
      _
    $region23: #{tpu_custom_call.1} parent=1 // pred_check_branch
      %24 = sbr.rel (0) target = $region25
    $region24: #{tpu_custom_call.1} parent=1 // pred_region
      _
    $region25: #{tpu_custom_call.1} parent=1 // pred_fallthru
      _
    // Predicated region
    $region26: #{tpu_custom_call.1} parent=1 // pred_check
      _
    $region27: #{tpu_custom_call.1} parent=1 // pred_check_branch
      %26 = sbr.rel (0) target = $region29
    $region28: #{tpu_custom_call.1} parent=1 // pred_region
      _
    $region29: #{tpu_custom_call.1} parent=1 // pred_fallthru
      _
    %v27 = vld [vmem:[%s1] sm:$0xff]
    %v28 = vld [vmem:[%s1 + $0x8] sm:$0xff]
    %v29 = vld [vmem:[%s1 + $0x10] sm:$0xff]
    %v30 = vld [vmem:[%s1 + $0x18] sm:$0xff]
    %v31 = vld [vmem:[%s1 + $0x20] sm:$0xff]
    %v32 = vld [vmem:[%s1 + $0x28] sm:$0xff]
    %v33 = vld [vmem:[%s1 + $0x30] sm:$0xff]
    %v34 = vld [vmem:[%s1 + $0x38] sm:$0xff]
    %v35 = vld [vmem:[%s1 + $0x40] sm:$0xff]
    %v36 = vld [vmem:[%s1 + $0x48] sm:$0xff]
    %v37 = vld [vmem:[%s1 + $0x50] sm:$0xff]
    %v38 = vld [vmem:[%s1 + $0x58] sm:$0xff]
    %v39 = vld [vmem:[%s6] sm:$0x1]
    %v40 = vmul.f32 %v39, 0.23025851
    %v41 = vmul.f32 %v40, 1.442695
    %v42 = vpow.pop %v41
    %v43 = vmul.f32 %v42, 0.5
    %v44 = vld [vmem:[%s0] sm:$0xff]
    %v45 = vld [vmem:[%s0 + $0x8] sm:$0x1]
    %s46 = scalar_lea.vmem %s0, 16
    %v47 = vld [vmem:[%s46] sm:$0xff]
    %v48 = vld [vmem:[%s46 + $0x8] sm:$0x1]
    %vm49 = vcmask 72704
    %v51 = vsel %vm49, %v27, 0
    %v54 = vsel %vm49, %v28, 0
    %v57 = vsel %vm49, %v29, 0
    %v60 = vsel %vm49, %v30, 0
    %v63 = vsel %vm49, %v31, 0
    %v66 = vsel %vm49, %v32, 0
    %v69 = vsel %vm49, %v33, 0
    %v72 = vsel %vm49, %v34, 0
    %v75 = vsel %vm49, %v35, 0
    %v78 = vsel %vm49, %v36, 0
    %v81 = vsel %vm49, %v37, 0
    %v84 = vsel %vm49, %v38, 0
    %vm86 = vcmask 1040384
    %v88 = vsel %vm86, %v45, 0
    %90 = vmatprep.subr.mxu0 0.0
    %91 = vmatpush1.msra.mxu0 %v44
    %92 = vmatprep.subr.mxu0 0.0
    %93 = vmatpush1.msra.mxu0 %v88
    %94 = vmatprep.subr.mxu0 0.0
    %95 = vmatpush1.msra.mxu0 0.0
    %96 = vmatprep.subr.mxu0 0.0
    %97 = vmatpush1.msra.mxu0 0.0
    %98 = vmatprep.subr.mxu0 0.0
    %99 = vmatpush1.msra.mxu0 0.0
    %100 = vmatprep.subr.mxu0 0.0
    %101 = vmatpush1.msra.mxu0 0.0
    %102 = vmatprep.subr.mxu0 0.0
    %103 = vmatpush1.msra.mxu0 0.0
    %104 = vmatprep.subr.mxu0 0.0
    %105 = vmatpush1.msra.mxu0 0.0
    %106 = vmatprep.subr.mxu0 0.0
    %107 = vmatpush1.msra.mxu0 0.0
    %108 = vmatprep.subr.mxu0 0.0
    %109 = vmatpush1.msra.mxu0 0.0
    %110 = vmatprep.subr.mxu0 0.0
    %111 = vmatpush1.msra.mxu0 0.0
    %112 = vmatprep.subr.mxu0 0.0
    %113 = vmatpush1.msra.mxu0 0.0
    %114 = vmatprep.subr.mxu0 0.0
    %115 = vmatpush1.msra.mxu0 0.0
    %116 = vmatprep.subr.mxu0 0.0
    %117 = vmatpush1.msra.mxu0 0.0
    %118 = vmatprep.subr.mxu0 0.0
    %119 = vmatpush1.msra.mxu0 0.0
    %120 = vmatprep.subr.mxu0 0.0
    %121 = vmatpush1.msra.mxu0 0.0
    %122 = vmatprep.subr.mxu0 0.0
    %123 = vmatpush1.msra.mxu0 0.0
    %124 = vmatprep.subr.mxu0 0.0
    %125 = vmatpush1.msra.mxu0 0.0
    %126 = vmatprep.subr.mxu0 0.0
    %127 = vmatpush1.msra.mxu0 0.0
    %128 = vmatprep.subr.mxu0 0.0
    %129 = vmatpush1.msra.mxu0 0.0
    %130 = vmatprep.subr.mxu0 0.0
    %131 = vmatpush1.msra.mxu0 0.0
    %132 = vmatprep.subr.mxu0 0.0
    %133 = vmatpush1.msra.mxu0 0.0
    %134 = vmatprep.subr.mxu0 0.0
    %135 = vmatpush1.msra.mxu0 0.0
    %136 = vmatprep.subr.mxu0 0.0
    %137 = vmatpush1.msra.mxu0 0.0
    %138 = vmatprep.subr.mxu0 0.0
    %139 = vmatpush1.msra.mxu0 0.0
    %140 = vmatprep.subr.mxu0 0.0
    %141 = vmatpush1.msra.mxu0 0.0
    %142 = vmatprep.subr.mxu0 0.0
    %143 = vmatpush1.msra.mxu0 0.0
    %144 = vmatprep.subr.mxu0 0.0
    %145 = vmatpush1.msra.mxu0 0.0
    %146 = vmatprep.subr.mxu0 0.0
    %147 = vmatpush1.msra.mxu0 0.0
    %148 = vmatprep.subr.mxu0 0.0
    %149 = vmatpush1.msra.mxu0 0.0
    %150 = vmatprep.subr.mxu0 0.0
    %151 = vmatpush1.msra.mxu0 0.0
    %152 = vmatprep.subr.mxu0 0.0
    %153 = vmatpush1.msra.mxu0 0.0
    %154 = vmatprep.mubr.f32.mxu0 0.0
    %155 = vmatmul.mubr.f32.gmra.mrb[0].mxu0 %v51
    %v156 = vpop.f32.mrb[0].mxu0
    %v157 = vadd.f32 0.0, %v156
    %v158 = vpop.f32.mrb[0].mxu0
    %159 = vmatprep.mubr.f32.mxu0 0.0
    %160 = vmatmul.mubr.f32.gmra.mrb[0].mxu0 %v54
    %v161 = vpop.f32.mrb[0].mxu0
    %v162 = vadd.f32 0.0, %v161
    %v163 = vpop.f32.mrb[0].mxu0
    %164 = vmatprep.mubr.f32.mxu0 0.0
    %165 = vmatmul.mubr.f32.gmra.mrb[0].mxu0 %v57
    %v166 = vpop.f32.mrb[0].mxu0
    %v167 = vadd.f32 0.0, %v166
    %v168 = vpop.f32.mrb[0].mxu0
    %169 = vmatprep.mubr.f32.mxu0 0.0
    %170 = vmatmul.mubr.f32.gmra.mrb[0].mxu0 %v60
    %v171 = vpop.f32.mrb[0].mxu0
    %v172 = vadd.f32 0.0, %v171
    %v173 = vpop.f32.mrb[0].mxu0
    %174 = vmatprep.mubr.f32.mxu0 0.0
    %175 = vmatmul.mubr.f32.gmra.mrb[0].mxu0 %v63
    %v176 = vpop.f32.mrb[0].mxu0
    %v177 = vadd.f32 0.0, %v176
    %v178 = vpop.f32.mrb[0].mxu0
    %179 = vmatprep.mubr.f32.mxu0 0.0
    %180 = vmatmul.mubr.f32.gmra.mrb[0].mxu0 %v66
    %v181 = vpop.f32.mrb[0].mxu0
    %v182 = vadd.f32 0.0, %v181
    %v183 = vpop.f32.mrb[0].mxu0
    %184 = vmatprep.mubr.f32.mxu0 0.0
    %185 = vmatmul.mubr.f32.gmra.mrb[0].mxu0 %v69
    %v186 = vpop.f32.mrb[0].mxu0
    %v187 = vadd.f32 0.0, %v186
    %v188 = vpop.f32.mrb[0].mxu0
    %189 = vmatprep.mubr.f32.mxu0 0.0
    %190 = vmatmul.mubr.f32.gmra.mrb[0].mxu0 %v72
    %v191 = vpop.f32.mrb[0].mxu0
    %v192 = vadd.f32 0.0, %v191
    %v193 = vpop.f32.mrb[0].mxu0
    %194 = vmatprep.mubr.f32.mxu0 0.0
    %195 = vmatmul.mubr.f32.gmra.mrb[0].mxu0 %v75
    %v196 = vpop.f32.mrb[0].mxu0
    %v197 = vadd.f32 0.0, %v196
    %v198 = vpop.f32.mrb[0].mxu0
    %199 = vmatprep.mubr.f32.mxu0 0.0
    %200 = vmatmul.mubr.f32.gmra.mrb[0].mxu0 %v78
    %v201 = vpop.f32.mrb[0].mxu0
    %v202 = vadd.f32 0.0, %v201
    %v203 = vpop.f32.mrb[0].mxu0
    %204 = vmatprep.mubr.f32.mxu0 0.0
    %205 = vmatmul.mubr.f32.gmra.mrb[0].mxu0 %v81
    %v206 = vpop.f32.mrb[0].mxu0
    %v207 = vadd.f32 0.0, %v206
    %v208 = vpop.f32.mrb[0].mxu0
    %209 = vmatprep.mubr.f32.mxu0 0.0
    %210 = vmatmul.mubr.f32.gmra.mrb[0].mxu0 %v84
    %v211 = vpop.f32.mrb[0].mxu0
    %v212 = vadd.f32 0.0, %v211
    %v213 = vpop.f32.mrb[0].mxu0
    %214 = vdwg.mxu0
    %v216 = vsel %vm86, %v48, 0
    %218 = vmatprep.subr.mxu0 0.0
    %219 = vmatpush1.msra.mxu0 %v47
    %220 = vmatprep.subr.mxu0 0.0
    %221 = vmatpush1.msra.mxu0 %v216
    %222 = vmatprep.subr.mxu0 0.0
    %223 = vmatpush1.msra.mxu0 0.0
    %224 = vmatprep.subr.mxu0 0.0
    %225 = vmatpush1.msra.mxu0 0.0
    %226 = vmatprep.subr.mxu0 0.0
    %227 = vmatpush1.msra.mxu0 0.0
    %228 = vmatprep.subr.mxu0 0.0
    %229 = vmatpush1.msra.mxu0 0.0
    %230 = vmatprep.subr.mxu0 0.0
    %231 = vmatpush1.msra.mxu0 0.0
    %232 = vmatprep.subr.mxu0 0.0
    %233 = vmatpush1.msra.mxu0 0.0
    %234 = vmatprep.subr.mxu0 0.0
    %235 = vmatpush1.msra.mxu0 0.0
    %236 = vmatprep.subr.mxu0 0.0
    %237 = vmatpush1.msra.mxu0 0.0
    %238 = vmatprep.subr.mxu0 0.0
    %239 = vmatpush1.msra.mxu0 0.0
    %240 = vmatprep.subr.mxu0 0.0
    %241 = vmatpush1.msra.mxu0 0.0
    %242 = vmatprep.subr.mxu0 0.0
    %243 = vmatpush1.msra.mxu0 0.0
    %244 = vmatprep.subr.mxu0 0.0
    %245 = vmatpush1.msra.mxu0 0.0
    %246 = vmatprep.subr.mxu0 0.0
    %247 = vmatpush1.msra.mxu0 0.0
    %248 = vmatprep.subr.mxu0 0.0
    %249 = vmatpush1.msra.mxu0 0.0
    %250 = vmatprep.subr.mxu0 0.0
    %251 = vmatpush1.msra.mxu0 0.0
    %252 = vmatprep.subr.mxu0 0.0
    %253 = vmatpush1.msra.mxu0 0.0
    %254 = vmatprep.subr.mxu0 0.0
    %255 = vmatpush1.msra.mxu0 0.0
    %256 = vmatprep.subr.mxu0 0.0
    %257 = vmatpush1.msra.mxu0 0.0
    %258 = vmatprep.subr.mxu0 0.0
    %259 = vmatpush1.msra.mxu0 0.0
    %260 = vmatprep.subr.mxu0 0.0
    %261 = vmatpush1.msra.mxu0 0.0
    %262 = vmatprep.subr.mxu0 0.0
    %263 = vmatpush1.msra.mxu0 0.0
    %264 = vmatprep.subr.mxu0 0.0
    %265 = vmatpush1.msra.mxu0 0.0
    %266 = vmatprep.subr.mxu0 0.0
    %267 = vmatpush1.msra.mxu0 0.0
    %268 = vmatprep.subr.mxu0 0.0
    %269 = vmatpush1.msra.mxu0 0.0
    %270 = vmatprep.subr.mxu0 0.0
    %271 = vmatpush1.msra.mxu0 0.0
    %272 = vmatprep.subr.mxu0 0.0
    %273 = vmatpush1.msra.mxu0 0.0
    %274 = vmatprep.subr.mxu0 0.0
    %275 = vmatpush1.msra.mxu0 0.0
    %276 = vmatprep.subr.mxu0 0.0
    %277 = vmatpush1.msra.mxu0 0.0
    %278 = vmatprep.subr.mxu0 0.0
    %279 = vmatpush1.msra.mxu0 0.0
    %280 = vmatprep.subr.mxu0 0.0
    %281 = vmatpush1.msra.mxu0 0.0
    %282 = vmatprep.mubr.f32.mxu0 0.0
    %283 = vmatmul.mubr.f32.gmra.mrb[0].mxu0 %v51
    %v284 = vpop.f32.mrb[0].mxu0
    %v285 = vadd.f32 0.0, %v284
    %v286 = vpop.f32.mrb[0].mxu0
    %287 = vmatprep.mubr.f32.mxu0 0.0
    %288 = vmatmul.mubr.f32.gmra.mrb[0].mxu0 %v54
    %v289 = vpop.f32.mrb[0].mxu0
    %v290 = vadd.f32 0.0, %v289
    %v291 = vpop.f32.mrb[0].mxu0
    %292 = vmatprep.mubr.f32.mxu0 0.0
    %293 = vmatmul.mubr.f32.gmra.mrb[0].mxu0 %v57
    %v294 = vpop.f32.mrb[0].mxu0
    %v295 = vadd.f32 0.0, %v294
    %v296 = vpop.f32.mrb[0].mxu0
    %297 = vmatprep.mubr.f32.mxu0 0.0
    %298 = vmatmul.mubr.f32.gmra.mrb[0].mxu0 %v60
    %v299 = vpop.f32.mrb[0].mxu0
    %v300 = vadd.f32 0.0, %v299
    %v301 = vpop.f32.mrb[0].mxu0
    %302 = vmatprep.mubr.f32.mxu0 0.0
    %303 = vmatmul.mubr.f32.gmra.mrb[0].mxu0 %v63
    %v304 = vpop.f32.mrb[0].mxu0
    %v305 = vadd.f32 0.0, %v304
    %v306 = vpop.f32.mrb[0].mxu0
    %307 = vmatprep.mubr.f32.mxu0 0.0
    %308 = vmatmul.mubr.f32.gmra.mrb[0].mxu0 %v66
    %v309 = vpop.f32.mrb[0].mxu0
    %v310 = vadd.f32 0.0, %v309
    %v311 = vpop.f32.mrb[0].mxu0
    %312 = vmatprep.mubr.f32.mxu0 0.0
    %313 = vmatmul.mubr.f32.gmra.mrb[0].mxu0 %v69
    %v314 = vpop.f32.mrb[0].mxu0
    %v315 = vadd.f32 0.0, %v314
    %v316 = vpop.f32.mrb[0].mxu0
    %317 = vmatprep.mubr.f32.mxu0 0.0
    %318 = vmatmul.mubr.f32.gmra.mrb[0].mxu0 %v72
    %v319 = vpop.f32.mrb[0].mxu0
    %v320 = vadd.f32 0.0, %v319
    %v321 = vpop.f32.mrb[0].mxu0
    %322 = vmatprep.mubr.f32.mxu0 0.0
    %323 = vmatmul.mubr.f32.gmra.mrb[0].mxu0 %v75
    %v324 = vpop.f32.mrb[0].mxu0
    %v325 = vadd.f32 0.0, %v324
    %v326 = vpop.f32.mrb[0].mxu0
    %327 = vmatprep.mubr.f32.mxu0 0.0
    %328 = vmatmul.mubr.f32.gmra.mrb[0].mxu0 %v78
    %v329 = vpop.f32.mrb[0].mxu0
    %v330 = vadd.f32 0.0, %v329
    %v331 = vpop.f32.mrb[0].mxu0
    %332 = vmatprep.mubr.f32.mxu0 0.0
    %333 = vmatmul.mubr.f32.gmra.mrb[0].mxu0 %v81
    %v334 = vpop.f32.mrb[0].mxu0
    %v335 = vadd.f32 0.0, %v334
    %v336 = vpop.f32.mrb[0].mxu0
    %337 = vmatprep.mubr.f32.mxu0 0.0
    %338 = vmatmul.mubr.f32.gmra.mrb[0].mxu0 %v84
    %v339 = vpop.f32.mrb[0].mxu0
    %v340 = vadd.f32 0.0, %v339
    %v341 = vpop.f32.mrb[0].mxu0
    %342 = vdwg.mxu0
    %v343 = vmul.f32 %v157, %v177
    %v344 = vmul.f32 %v162, %v182
    %v345 = vmul.f32 %v167, %v187
    %v346 = vmul.f32 %v172, %v192
    %v347 = vmul.f32 %v285, %v305
    %v348 = vmul.f32 %v290, %v310
    %v349 = vmul.f32 %v295, %v315
    %v350 = vmul.f32 %v300, %v320
    %v351 = vadd.f32 %v343, %v347
    %v352 = vadd.f32 %v344, %v348
    %v353 = vadd.f32 %v345, %v349
    %v354 = vadd.f32 %v346, %v350
    %v355 = vmul.f32 %v285, %v177
    %v356 = vmul.f32 %v290, %v182
    %v357 = vmul.f32 %v295, %v187
    %v358 = vmul.f32 %v300, %v192
    %v359 = vmul.f32 %v157, %v305
    %v360 = vmul.f32 %v162, %v310
    %v361 = vmul.f32 %v167, %v315
    %v362 = vmul.f32 %v172, %v320
    %v363 = vsub.f32 %v355, %v359
    %v364 = vsub.f32 %v356, %v360
    %v365 = vsub.f32 %v357, %v361
    %v366 = vsub.f32 %v358, %v362
    %s367 = scalar_lea.vmem %s0, 32
    %v368 = vld [vmem:[%s367] sm:$0xff]
    %v369 = vld [vmem:[%s367 + $0x8] sm:$0x1]
    %s370 = scalar_lea.vmem %s0, 48
    %v371 = vld [vmem:[%s370] sm:$0xff]
    %v372 = vld [vmem:[%s370 + $0x8] sm:$0x1]
    %v374 = vsel %vm86, %v369, 0
    %376 = vmatprep.subr.mxu0 0.0
    %377 = vmatpush1.msra.mxu0 %v368
    %378 = vmatprep.subr.mxu0 0.0
    %379 = vmatpush1.msra.mxu0 %v374
    %380 = vmatprep.subr.mxu0 0.0
    %381 = vmatpush1.msra.mxu0 0.0
    %382 = vmatprep.subr.mxu0 0.0
    %383 = vmatpush1.msra.mxu0 0.0
    %384 = vmatprep.subr.mxu0 0.0
    %385 = vmatpush1.msra.mxu0 0.0
    %386 = vmatprep.subr.mxu0 0.0
    %387 = vmatpush1.msra.mxu0 0.0
    %388 = vmatprep.subr.mxu0 0.0
    %389 = vmatpush1.msra.mxu0 0.0
    %390 = vmatprep.subr.mxu0 0.0
    %391 = vmatpush1.msra.mxu0 0.0
    %392 = vmatprep.subr.mxu0 0.0
    %393 = vmatpush1.msra.mxu0 0.0
    %394 = vmatprep.subr.mxu0 0.0
    %395 = vmatpush1.msra.mxu0 0.0
    %396 = vmatprep.subr.mxu0 0.0
    %397 = vmatpush1.msra.mxu0 0.0
    %398 = vmatprep.subr.mxu0 0.0
    %399 = vmatpush1.msra.mxu0 0.0
    %400 = vmatprep.subr.mxu0 0.0
    %401 = vmatpush1.msra.mxu0 0.0
    %402 = vmatprep.subr.mxu0 0.0
    %403 = vmatpush1.msra.mxu0 0.0
    %404 = vmatprep.subr.mxu0 0.0
    %405 = vmatpush1.msra.mxu0 0.0
    %406 = vmatprep.subr.mxu0 0.0
    %407 = vmatpush1.msra.mxu0 0.0
    %408 = vmatprep.subr.mxu0 0.0
    %409 = vmatpush1.msra.mxu0 0.0
    %410 = vmatprep.subr.mxu0 0.0
    %411 = vmatpush1.msra.mxu0 0.0
    %412 = vmatprep.subr.mxu0 0.0
    %413 = vmatpush1.msra.mxu0 0.0
    %414 = vmatprep.subr.mxu0 0.0
    %415 = vmatpush1.msra.mxu0 0.0
    %416 = vmatprep.subr.mxu0 0.0
    %417 = vmatpush1.msra.mxu0 0.0
    %418 = vmatprep.subr.mxu0 0.0
    %419 = vmatpush1.msra.mxu0 0.0
    %420 = vmatprep.subr.mxu0 0.0
    %421 = vmatpush1.msra.mxu0 0.0
    %422 = vmatprep.subr.mxu0 0.0
    %423 = vmatpush1.msra.mxu0 0.0
    %424 = vmatprep.subr.mxu0 0.0
    %425 = vmatpush1.msra.mxu0 0.0
    %426 = vmatprep.subr.mxu0 0.0
    %427 = vmatpush1.msra.mxu0 0.0
    %428 = vmatprep.subr.mxu0 0.0
    %429 = vmatpush1.msra.mxu0 0.0
    %430 = vmatprep.subr.mxu0 0.0
    %431 = vmatpush1.msra.mxu0 0.0
    %432 = vmatprep.subr.mxu0 0.0
    %433 = vmatpush1.msra.mxu0 0.0
    %434 = vmatprep.subr.mxu0 0.0
    %435 = vmatpush1.msra.mxu0 0.0
    %436 = vmatprep.subr.mxu0 0.0
    %437 = vmatpush1.msra.mxu0 0.0
    %438 = vmatprep.subr.mxu0 0.0
    %439 = vmatpush1.msra.mxu0 0.0
    %440 = vmatprep.mubr.f32.mxu0 0.0
    %441 = vmatmul.mubr.f32.gmra.mrb[0].mxu0 %v51
    %v442 = vpop.f32.mrb[0].mxu0
    %v443 = vadd.f32 0.0, %v442
    %v444 = vpop.f32.mrb[0].mxu0
    %445 = vmatprep.mubr.f32.mxu0 0.0
    %446 = vmatmul.mubr.f32.gmra.mrb[0].mxu0 %v54
    %v447 = vpop.f32.mrb[0].mxu0
    %v448 = vadd.f32 0.0, %v447
    %v449 = vpop.f32.mrb[0].mxu0
    %450 = vmatprep.mubr.f32.mxu0 0.0
    %451 = vmatmul.mubr.f32.gmra.mrb[0].mxu0 %v57
    %v452 = vpop.f32.mrb[0].mxu0
    %v453 = vadd.f32 0.0, %v452
    %v454 = vpop.f32.mrb[0].mxu0
    %455 = vmatprep.mubr.f32.mxu0 0.0
    %456 = vmatmul.mubr.f32.gmra.mrb[0].mxu0 %v60
    %v457 = vpop.f32.mrb[0].mxu0
    %v458 = vadd.f32 0.0, %v457
    %v459 = vpop.f32.mrb[0].mxu0
    %460 = vmatprep.mubr.f32.mxu0 0.0
    %461 = vmatmul.mubr.f32.gmra.mrb[0].mxu0 %v63
    %v462 = vpop.f32.mrb[0].mxu0
    %v463 = vadd.f32 0.0, %v462
    %v464 = vpop.f32.mrb[0].mxu0
    %465 = vmatprep.mubr.f32.mxu0 0.0
    %466 = vmatmul.mubr.f32.gmra.mrb[0].mxu0 %v66
    %v467 = vpop.f32.mrb[0].mxu0
    %v468 = vadd.f32 0.0, %v467
    %v469 = vpop.f32.mrb[0].mxu0
    %470 = vmatprep.mubr.f32.mxu0 0.0
    %471 = vmatmul.mubr.f32.gmra.mrb[0].mxu0 %v69
    %v472 = vpop.f32.mrb[0].mxu0
    %v473 = vadd.f32 0.0, %v472
    %v474 = vpop.f32.mrb[0].mxu0
    %475 = vmatprep.mubr.f32.mxu0 0.0
    %476 = vmatmul.mubr.f32.gmra.mrb[0].mxu0 %v72
    %v477 = vpop.f32.mrb[0].mxu0
    %v478 = vadd.f32 0.0, %v477
    %v479 = vpop.f32.mrb[0].mxu0
    %480 = vmatprep.mubr.f32.mxu0 0.0
    %481 = vmatmul.mubr.f32.gmra.mrb[0].mxu0 %v75
    %v482 = vpop.f32.mrb[0].mxu0
    %v483 = vadd.f32 0.0, %v482
    %v484 = vpop.f32.mrb[0].mxu0
    %485 = vmatprep.mubr.f32.mxu0 0.0
    %486 = vmatmul.mubr.f32.gmra.mrb[0].mxu0 %v78
    %v487 = vpop.f32.mrb[0].mxu0
    %v488 = vadd.f32 0.0, %v487
    %v489 = vpop.f32.mrb[0].mxu0
    %490 = vmatprep.mubr.f32.mxu0 0.0
    %491 = vmatmul.mubr.f32.gmra.mrb[0].mxu0 %v81
    %v492 = vpop.f32.mrb[0].mxu0
    %v493 = vadd.f32 0.0, %v492
    %v494 = vpop.f32.mrb[0].mxu0
    %495 = vmatprep.mubr.f32.mxu0 0.0
    %496 = vmatmul.mubr.f32.gmra.mrb[0].mxu0 %v84
    %v497 = vpop.f32.mrb[0].mxu0
    %v498 = vadd.f32 0.0, %v497
    %v499 = vpop.f32.mrb[0].mxu0
    %500 = vdwg.mxu0
    %v502 = vsel %vm86, %v372, 0
    %504 = vmatprep.subr.mxu0 0.0
    %505 = vmatpush1.msra.mxu0 %v371
    %506 = vmatprep.subr.mxu0 0.0
    %507 = vmatpush1.msra.mxu0 %v502
    %508 = vmatprep.subr.mxu0 0.0
    %509 = vmatpush1.msra.mxu0 0.0
    %510 = vmatprep.subr.mxu0 0.0
    %511 = vmatpush1.msra.mxu0 0.0
    %512 = vmatprep.subr.mxu0 0.0
    %513 = vmatpush1.msra.mxu0 0.0
    %514 = vmatprep.subr.mxu0 0.0
    %515 = vmatpush1.msra.mxu0 0.0
    %516 = vmatprep.subr.mxu0 0.0
    %517 = vmatpush1.msra.mxu0 0.0
    %518 = vmatprep.subr.mxu0 0.0
    %519 = vmatpush1.msra.mxu0 0.0
    %520 = vmatprep.subr.mxu0 0.0
    %521 = vmatpush1.msra.mxu0 0.0
    %522 = vmatprep.subr.mxu0 0.0
    %523 = vmatpush1.msra.mxu0 0.0
    %524 = vmatprep.subr.mxu0 0.0
    %525 = vmatpush1.msra.mxu0 0.0
    %526 = vmatprep.subr.mxu0 0.0
    %527 = vmatpush1.msra.mxu0 0.0
    %528 = vmatprep.subr.mxu0 0.0
    %529 = vmatpush1.msra.mxu0 0.0
    %530 = vmatprep.subr.mxu0 0.0
    %531 = vmatpush1.msra.mxu0 0.0
    %532 = vmatprep.subr.mxu0 0.0
    %533 = vmatpush1.msra.mxu0 0.0
    %534 = vmatprep.subr.mxu0 0.0
    %535 = vmatpush1.msra.mxu0 0.0
    %536 = vmatprep.subr.mxu0 0.0
    %537 = vmatpush1.msra.mxu0 0.0
    %538 = vmatprep.subr.mxu0 0.0
    %539 = vmatpush1.msra.mxu0 0.0
    %540 = vmatprep.subr.mxu0 0.0
    %541 = vmatpush1.msra.mxu0 0.0
    %542 = vmatprep.subr.mxu0 0.0
    %543 = vmatpush1.msra.mxu0 0.0
    %544 = vmatprep.subr.mxu0 0.0
    %545 = vmatpush1.msra.mxu0 0.0
    %546 = vmatprep.subr.mxu0 0.0
    %547 = vmatpush1.msra.mxu0 0.0
    %548 = vmatprep.subr.mxu0 0.0
    %549 = vmatpush1.msra.mxu0 0.0
    %550 = vmatprep.subr.mxu0 0.0
    %551 = vmatpush1.msra.mxu0 0.0
    %552 = vmatprep.subr.mxu0 0.0
    %553 = vmatpush1.msra.mxu0 0.0
    %554 = vmatprep.subr.mxu0 0.0
    %555 = vmatpush1.msra.mxu0 0.0
    %556 = vmatprep.subr.mxu0 0.0
    %557 = vmatpush1.msra.mxu0 0.0
    %558 = vmatprep.subr.mxu0 0.0
    %559 = vmatpush1.msra.mxu0 0.0
    %560 = vmatprep.subr.mxu0 0.0
    %561 = vmatpush1.msra.mxu0 0.0
    %562 = vmatprep.subr.mxu0 0.0
    %563 = vmatpush1.msra.mxu0 0.0
    %564 = vmatprep.subr.mxu0 0.0
    %565 = vmatpush1.msra.mxu0 0.0
    %566 = vmatprep.subr.mxu0 0.0
    %567 = vmatpush1.msra.mxu0 0.0
    %568 = vmatprep.mubr.f32.mxu0 0.0
    %569 = vmatmul.mubr.f32.gmra.mrb[0].mxu0 %v51
    %v570 = vpop.f32.mrb[0].mxu0
    %v571 = vadd.f32 0.0, %v570
    %v572 = vpop.f32.mrb[0].mxu0
    %573 = vmatprep.mubr.f32.mxu0 0.0
    %574 = vmatmul.mubr.f32.gmra.mrb[0].mxu0 %v54
    %v575 = vpop.f32.mrb[0].mxu0
    %v576 = vadd.f32 0.0, %v575
    %v577 = vpop.f32.mrb[0].mxu0
    %578 = vmatprep.mubr.f32.mxu0 0.0
    %579 = vmatmul.mubr.f32.gmra.mrb[0].mxu0 %v57
    %v580 = vpop.f32.mrb[0].mxu0
    %v581 = vadd.f32 0.0, %v580
    %v582 = vpop.f32.mrb[0].mxu0
    %583 = vmatprep.mubr.f32.mxu0 0.0
    %584 = vmatmul.mubr.f32.gmra.mrb[0].mxu0 %v60
    %v585 = vpop.f32.mrb[0].mxu0
    %v586 = vadd.f32 0.0, %v585
    %v587 = vpop.f32.mrb[0].mxu0
    %588 = vmatprep.mubr.f32.mxu0 0.0
    %589 = vmatmul.mubr.f32.gmra.mrb[0].mxu0 %v63
    %v590 = vpop.f32.mrb[0].mxu0
    %v591 = vadd.f32 0.0, %v590
    %v592 = vpop.f32.mrb[0].mxu0
    %593 = vmatprep.mubr.f32.mxu0 0.0
    %594 = vmatmul.mubr.f32.gmra.mrb[0].mxu0 %v66
    %v595 = vpop.f32.mrb[0].mxu0
    %v596 = vadd.f32 0.0, %v595
    %v597 = vpop.f32.mrb[0].mxu0
    %598 = vmatprep.mubr.f32.mxu0 0.0
    %599 = vmatmul.mubr.f32.gmra.mrb[0].mxu0 %v69
    %v600 = vpop.f32.mrb[0].mxu0
    %v601 = vadd.f32 0.0, %v600
    %v602 = vpop.f32.mrb[0].mxu0
    %603 = vmatprep.mubr.f32.mxu0 0.0
    %604 = vmatmul.mubr.f32.gmra.mrb[0].mxu0 %v72
    %v605 = vpop.f32.mrb[0].mxu0
    %v606 = vadd.f32 0.0, %v605
    %v607 = vpop.f32.mrb[0].mxu0
    %608 = vmatprep.mubr.f32.mxu0 0.0
    %609 = vmatmul.mubr.f32.gmra.mrb[0].mxu0 %v75
    %v610 = vpop.f32.mrb[0].mxu0
    %v611 = vadd.f32 0.0, %v610
    %v612 = vpop.f32.mrb[0].mxu0
    %613 = vmatprep.mubr.f32.mxu0 0.0
    %614 = vmatmul.mubr.f32.gmra.mrb[0].mxu0 %v78
    %v615 = vpop.f32.mrb[0].mxu0
    %v616 = vadd.f32 0.0, %v615
    %v617 = vpop.f32.mrb[0].mxu0
    %618 = vmatprep.mubr.f32.mxu0 0.0
    %619 = vmatmul.mubr.f32.gmra.mrb[0].mxu0 %v81
    %v620 = vpop.f32.mrb[0].mxu0
    %v621 = vadd.f32 0.0, %v620
    %v622 = vpop.f32.mrb[0].mxu0
    %623 = vmatprep.mubr.f32.mxu0 0.0
    %624 = vmatmul.mubr.f32.gmra.mrb[0].mxu0 %v84
    %v625 = vpop.f32.mrb[0].mxu0
    %v626 = vadd.f32 0.0, %v625
    %v627 = vpop.f32.mrb[0].mxu0
    %628 = vdwg.mxu0
    %v629 = vmul.f32 %v443, %v463
    %v630 = vmul.f32 %v448, %v468
    %v631 = vmul.f32 %v453, %v473
    %v632 = vmul.f32 %v458, %v478
    %v633 = vmul.f32 %v571, %v591
    %v634 = vmul.f32 %v576, %v596
    %v635 = vmul.f32 %v581, %v601
    %v636 = vmul.f32 %v586, %v606
    %v637 = vadd.f32 %v629, %v633
    %v638 = vadd.f32 %v630, %v634
    %v639 = vadd.f32 %v631, %v635
    %v640 = vadd.f32 %v632, %v636
    %v641 = vmul.f32 %v571, %v463
    %v642 = vmul.f32 %v576, %v468
    %v643 = vmul.f32 %v581, %v473
    %v644 = vmul.f32 %v586, %v478
    %v645 = vmul.f32 %v443, %v591
    %v646 = vmul.f32 %v448, %v596
    %v647 = vmul.f32 %v453, %v601
    %v648 = vmul.f32 %v458, %v606
    %v649 = vsub.f32 %v641, %v645
    %v650 = vsub.f32 %v642, %v646
    %v651 = vsub.f32 %v643, %v647
    %v652 = vsub.f32 %v644, %v648
    %v653 = vadd.f32 %v351, %v637
    %v654 = vadd.f32 %v352, %v638
    %v655 = vadd.f32 %v353, %v639
    %v656 = vadd.f32 %v354, %v640
    %v657 = vadd.f32 %v363, %v649
    %v658 = vadd.f32 %v364, %v650
    %v659 = vadd.f32 %v365, %v651
    %v660 = vadd.f32 %v366, %v652
    %v661 = vmul.f32 %v653, %v197
    %v662 = vmul.f32 %v654, %v202
    %v663 = vmul.f32 %v655, %v207
    %v664 = vmul.f32 %v656, %v212
    %v665 = vmul.f32 %v657, %v325
    %v666 = vmul.f32 %v658, %v330
    %v667 = vmul.f32 %v659, %v335
    %v668 = vmul.f32 %v660, %v340
    %v669 = vsub.f32 %v661, %v665
    %v670 = vsub.f32 %v662, %v666
    %v671 = vsub.f32 %v663, %v667
    %v672 = vsub.f32 %v664, %v668
    %v673 = vmul.f32 %v653, %v325
    %v674 = vmul.f32 %v654, %v330
    %v675 = vmul.f32 %v655, %v335
    %v676 = vmul.f32 %v656, %v340
    %v677 = vmul.f32 %v657, %v197
    %v678 = vmul.f32 %v658, %v202
    %v679 = vmul.f32 %v659, %v207
    %v680 = vmul.f32 %v660, %v212
    %v681 = vadd.f32 %v673, %v677
    %v682 = vadd.f32 %v674, %v678
    %v683 = vadd.f32 %v675, %v679
    %v684 = vadd.f32 %v676, %v680
    %v685 = vld [vmem:[%s2] sm:$0xf]
    %v686 = vld [vmem:[%s3] sm:$0xf]
    %vm687 = vcmask 261120
    %v689 = vsel %vm687, %v686, 0
    %691 = vmatprep.subr.mxu0 0.0
    %692 = vmatpush1.msra.mxu0 %v681
    %693 = vmatprep.subr.mxu0 0.0
    %694 = vmatpush1.msra.mxu0 %v682
    %695 = vmatprep.subr.mxu0 0.0
    %696 = vmatpush1.msra.mxu0 %v683
    %697 = vmatprep.subr.mxu0 0.0
    %698 = vmatpush1.msra.mxu0 %v684
    %699 = vmatprep.subr.mxu0 0.0
    %700 = vmatpush1.msra.mxu0 0.0
    %701 = vmatprep.subr.mxu0 0.0
    %702 = vmatpush1.msra.mxu0 0.0
    %703 = vmatprep.subr.mxu0 0.0
    %704 = vmatpush1.msra.mxu0 0.0
    %705 = vmatprep.subr.mxu0 0.0
    %706 = vmatpush1.msra.mxu0 0.0
    %707 = vmatprep.subr.mxu0 0.0
    %708 = vmatpush1.msra.mxu0 0.0
    %709 = vmatprep.subr.mxu0 0.0
    %710 = vmatpush1.msra.mxu0 0.0
    %711 = vmatprep.subr.mxu0 0.0
    %712 = vmatpush1.msra.mxu0 0.0
    %713 = vmatprep.subr.mxu0 0.0
    %714 = vmatpush1.msra.mxu0 0.0
    %715 = vmatprep.subr.mxu0 0.0
    %716 = vmatpush1.msra.mxu0 0.0
    %717 = vmatprep.subr.mxu0 0.0
    %718 = vmatpush1.msra.mxu0 0.0
    %719 = vmatprep.subr.mxu0 0.0
    %720 = vmatpush1.msra.mxu0 0.0
    %721 = vmatprep.subr.mxu0 0.0
    %722 = vmatpush1.msra.mxu0 0.0
    %723 = vmatprep.subr.mxu0 0.0
    %724 = vmatpush1.msra.mxu0 0.0
    %725 = vmatprep.subr.mxu0 0.0
    %726 = vmatpush1.msra.mxu0 0.0
    %727 = vmatprep.subr.mxu0 0.0
    %728 = vmatpush1.msra.mxu0 0.0
    %729 = vmatprep.subr.mxu0 0.0
    %730 = vmatpush1.msra.mxu0 0.0
    %731 = vmatprep.subr.mxu0 0.0
    %732 = vmatpush1.msra.mxu0 0.0
    %733 = vmatprep.subr.mxu0 0.0
    %734 = vmatpush1.msra.mxu0 0.0
    %735 = vmatprep.subr.mxu0 0.0
    %736 = vmatpush1.msra.mxu0 0.0
    %737 = vmatprep.subr.mxu0 0.0
    %738 = vmatpush1.msra.mxu0 0.0
    %739 = vmatprep.subr.mxu0 0.0
    %740 = vmatpush1.msra.mxu0 0.0
    %741 = vmatprep.subr.mxu0 0.0
    %742 = vmatpush1.msra.mxu0 0.0
    %743 = vmatprep.subr.mxu0 0.0
    %744 = vmatpush1.msra.mxu0 0.0
    %745 = vmatprep.subr.mxu0 0.0
    %746 = vmatpush1.msra.mxu0 0.0
    %747 = vmatprep.subr.mxu0 0.0
    %748 = vmatpush1.msra.mxu0 0.0
    %749 = vmatprep.subr.mxu0 0.0
    %750 = vmatpush1.msra.mxu0 0.0
    %751 = vmatprep.subr.mxu0 0.0
    %752 = vmatpush1.msra.mxu0 0.0
    %753 = vmatprep.subr.mxu0 0.0
    %754 = vmatpush1.msra.mxu0 0.0
    %755 = vmatprep.mubr.f32.mxu0 0.0
    %756 = vmatmul.mubr.f32.gmra.mrb[0].mxu0 %v689
    %v757 = vpop.f32.mrb[0].mxu0
    %v758 = vadd.f32 0.0, %v757
    %v759 = vpop.f32.mrb[0].mxu0
    %760 = vdwg.mxu0
    %v762 = vsel %vm687, %v685, 0
    %764 = vmatprep.subr.mxu0 0.0
    %765 = vmatpush1.msra.mxu0 %v669
    %766 = vmatprep.subr.mxu0 0.0
    %767 = vmatpush1.msra.mxu0 %v670
    %768 = vmatprep.subr.mxu0 0.0
    %769 = vmatpush1.msra.mxu0 %v671
    %770 = vmatprep.subr.mxu0 0.0
    %771 = vmatpush1.msra.mxu0 %v672
    %772 = vmatprep.subr.mxu0 0.0
    %773 = vmatpush1.msra.mxu0 0.0
    %774 = vmatprep.subr.mxu0 0.0
    %775 = vmatpush1.msra.mxu0 0.0
    %776 = vmatprep.subr.mxu0 0.0
    %777 = vmatpush1.msra.mxu0 0.0
    %778 = vmatprep.subr.mxu0 0.0
    %779 = vmatpush1.msra.mxu0 0.0
    %780 = vmatprep.subr.mxu0 0.0
    %781 = vmatpush1.msra.mxu0 0.0
    %782 = vmatprep.subr.mxu0 0.0
    %783 = vmatpush1.msra.mxu0 0.0
    %784 = vmatprep.subr.mxu0 0.0
    %785 = vmatpush1.msra.mxu0 0.0
    %786 = vmatprep.subr.mxu0 0.0
    %787 = vmatpush1.msra.mxu0 0.0
    %788 = vmatprep.subr.mxu0 0.0
    %789 = vmatpush1.msra.mxu0 0.0
    %790 = vmatprep.subr.mxu0 0.0
    %791 = vmatpush1.msra.mxu0 0.0
    %792 = vmatprep.subr.mxu0 0.0
    %793 = vmatpush1.msra.mxu0 0.0
    %794 = vmatprep.subr.mxu0 0.0
    %795 = vmatpush1.msra.mxu0 0.0
    %796 = vmatprep.subr.mxu0 0.0
    %797 = vmatpush1.msra.mxu0 0.0
    %798 = vmatprep.subr.mxu0 0.0
    %799 = vmatpush1.msra.mxu0 0.0
    %800 = vmatprep.subr.mxu0 0.0
    %801 = vmatpush1.msra.mxu0 0.0
    %802 = vmatprep.subr.mxu0 0.0
    %803 = vmatpush1.msra.mxu0 0.0
    %804 = vmatprep.subr.mxu0 0.0
    %805 = vmatpush1.msra.mxu0 0.0
    %806 = vmatprep.subr.mxu0 0.0
    %807 = vmatpush1.msra.mxu0 0.0
    %808 = vmatprep.subr.mxu0 0.0
    %809 = vmatpush1.msra.mxu0 0.0
    %810 = vmatprep.subr.mxu0 0.0
    %811 = vmatpush1.msra.mxu0 0.0
    %812 = vmatprep.subr.mxu0 0.0
    %813 = vmatpush1.msra.mxu0 0.0
    %814 = vmatprep.subr.mxu0 0.0
    %815 = vmatpush1.msra.mxu0 0.0
    %816 = vmatprep.subr.mxu0 0.0
    %817 = vmatpush1.msra.mxu0 0.0
    %818 = vmatprep.subr.mxu0 0.0
    %819 = vmatpush1.msra.mxu0 0.0
    %820 = vmatprep.subr.mxu0 0.0
    %821 = vmatpush1.msra.mxu0 0.0
    %822 = vmatprep.subr.mxu0 0.0
    %823 = vmatpush1.msra.mxu0 0.0
    %824 = vmatprep.subr.mxu0 0.0
    %825 = vmatpush1.msra.mxu0 0.0
    %826 = vmatprep.subr.mxu0 0.0
    %827 = vmatpush1.msra.mxu0 0.0
    %828 = vmatprep.mubr.f32.mxu0 0.0
    %829 = vmatmul.mubr.f32.gmra.mrb[0].mxu0 %v762
    %v830 = vpop.f32.mrb[0].mxu0
    %v831 = vadd.f32 %v758, %v830
    %v832 = vpop.f32.mrb[0].mxu0
    %833 = vdwg.mxu0
    %vm834 = vcmp.gt.f32.partialorder %v831, 0.0
    %v835 = vmul.f32 %v831, 0.01
    %v836 = vsel %vm834, %v831, %v835
    %v837 = vld [vmem:[%s4] sm:$0xff]
    %v838 = vld [vmem:[%s4 + $0x8] sm:$0xff]
    %v839 = vld [vmem:[%s4 + $0x10] sm:$0xf]
    %vm840 = vcmask 31744
    %v842 = vsel %vm840, %v837, 0
    %v845 = vsel %vm840, %v838, 0
    %v848 = vsel %vm840, %v839, 0
    %vm850 = vcmask 1043456
    %v852 = vsel %vm850, %v836, 0
    %854 = vmatprep.subr.mxu0 0.0
    %855 = vmatpush1.msra.mxu0 %v852
    %856 = vmatprep.subr.mxu0 0.0
    %857 = vmatpush1.msra.mxu0 0.0
    %858 = vmatprep.subr.mxu0 0.0
    %859 = vmatpush1.msra.mxu0 0.0
    %860 = vmatprep.subr.mxu0 0.0
    %861 = vmatpush1.msra.mxu0 0.0
    %862 = vmatprep.subr.mxu0 0.0
    %863 = vmatpush1.msra.mxu0 0.0
    %864 = vmatprep.subr.mxu0 0.0
    %865 = vmatpush1.msra.mxu0 0.0
    %866 = vmatprep.subr.mxu0 0.0
    %867 = vmatpush1.msra.mxu0 0.0
    %868 = vmatprep.subr.mxu0 0.0
    %869 = vmatpush1.msra.mxu0 0.0
    %870 = vmatprep.subr.mxu0 0.0
    %871 = vmatpush1.msra.mxu0 0.0
    %872 = vmatprep.subr.mxu0 0.0
    %873 = vmatpush1.msra.mxu0 0.0
    %874 = vmatprep.subr.mxu0 0.0
    %875 = vmatpush1.msra.mxu0 0.0
    %876 = vmatprep.subr.mxu0 0.0
    %877 = vmatpush1.msra.mxu0 0.0
    %878 = vmatprep.subr.mxu0 0.0
    %879 = vmatpush1.msra.mxu0 0.0
    %880 = vmatprep.subr.mxu0 0.0
    %881 = vmatpush1.msra.mxu0 0.0
    %882 = vmatprep.subr.mxu0 0.0
    %883 = vmatpush1.msra.mxu0 0.0
    %884 = vmatprep.subr.mxu0 0.0
    %885 = vmatpush1.msra.mxu0 0.0
    %886 = vmatprep.subr.mxu0 0.0
    %887 = vmatpush1.msra.mxu0 0.0
    %888 = vmatprep.subr.mxu0 0.0
    %889 = vmatpush1.msra.mxu0 0.0
    %890 = vmatprep.subr.mxu0 0.0
    %891 = vmatpush1.msra.mxu0 0.0
    %892 = vmatprep.subr.mxu0 0.0
    %893 = vmatpush1.msra.mxu0 0.0
    %894 = vmatprep.subr.mxu0 0.0
    %895 = vmatpush1.msra.mxu0 0.0
    %896 = vmatprep.subr.mxu0 0.0
    %897 = vmatpush1.msra.mxu0 0.0
    %898 = vmatprep.subr.mxu0 0.0
    %899 = vmatpush1.msra.mxu0 0.0
    %900 = vmatprep.subr.mxu0 0.0
    %901 = vmatpush1.msra.mxu0 0.0
    %902 = vmatprep.subr.mxu0 0.0
    %903 = vmatpush1.msra.mxu0 0.0
    %904 = vmatprep.subr.mxu0 0.0
    %905 = vmatpush1.msra.mxu0 0.0
    %906 = vmatprep.subr.mxu0 0.0
    %907 = vmatpush1.msra.mxu0 0.0
    %908 = vmatprep.subr.mxu0 0.0
    %909 = vmatpush1.msra.mxu0 0.0
    %910 = vmatprep.subr.mxu0 0.0
    %911 = vmatpush1.msra.mxu0 0.0
    %912 = vmatprep.subr.mxu0 0.0
    %913 = vmatpush1.msra.mxu0 0.0
    %914 = vmatprep.subr.mxu0 0.0
    %915 = vmatpush1.msra.mxu0 0.0
    %916 = vmatprep.subr.mxu0 0.0
    %917 = vmatpush1.msra.mxu0 0.0
    %918 = vmatprep.mubr.f32.mxu0 0.0
    %919 = vmatmul.mubr.f32.gmra.mrb[0].mxu0 %v842
    %v920 = vpop.f32.mrb[0].mxu0
    %v921 = vadd.f32 0.0, %v920
    %v922 = vpop.f32.mrb[0].mxu0
    %923 = vmatprep.mubr.f32.mxu0 0.0
    %924 = vmatmul.mubr.f32.gmra.mrb[0].mxu0 %v845
    %v925 = vpop.f32.mrb[0].mxu0
    %v926 = vadd.f32 0.0, %v925
    %v927 = vpop.f32.mrb[0].mxu0
    %928 = vmatprep.mubr.f32.mxu0 0.0
    %929 = vmatmul.mubr.f32.gmra.mrb[0].mxu0 %v848
    %v930 = vpop.f32.mrb[0].mxu0
    %v931 = vadd.f32 0.0, %v930
    %v932 = vpop.f32.mrb[0].mxu0
    %933 = vdwg.mxu0
    %vm934 = vcmp.gt.f32.partialorder %v921, 0.0
    %vm935 = vcmp.gt.f32.partialorder %v926, 0.0
    %vm936 = vcmp.gt.f32.partialorder %v931, 0.0
    %v937 = vmul.f32 %v921, 0.01
    %v938 = vmul.f32 %v926, 0.01
    %v939 = vmul.f32 %v931, 0.01
    %v940 = vsel %vm934, %v921, %v937
    %v941 = vsel %vm935, %v926, %v938
    %v942 = vsel %vm936, %v931, %v939
    %v943 = vld [vmem:[%s5] sm:$0x3]
    %vm944 = vcmask 162816
    %v946 = vsel %vm944, %v943, 0
    %v949 = vsel %vm850, %v942, 0
    %951 = vmatprep.subr.mxu0 0.0
    %952 = vmatpush1.msra.mxu0 %v940
    %953 = vmatprep.subr.mxu0 0.0
    %954 = vmatpush1.msra.mxu0 %v941
    %955 = vmatprep.subr.mxu0 0.0
    %956 = vmatpush1.msra.mxu0 %v949
    %957 = vmatprep.subr.mxu0 0.0
    %958 = vmatpush1.msra.mxu0 0.0
    %959 = vmatprep.subr.mxu0 0.0
    %960 = vmatpush1.msra.mxu0 0.0
    %961 = vmatprep.subr.mxu0 0.0
    %962 = vmatpush1.msra.mxu0 0.0
    %963 = vmatprep.subr.mxu0 0.0
    %964 = vmatpush1.msra.mxu0 0.0
    %965 = vmatprep.subr.mxu0 0.0
    %966 = vmatpush1.msra.mxu0 0.0
    %967 = vmatprep.subr.mxu0 0.0
    %968 = vmatpush1.msra.mxu0 0.0
    %969 = vmatprep.subr.mxu0 0.0
    %970 = vmatpush1.msra.mxu0 0.0
    %971 = vmatprep.subr.mxu0 0.0
    %972 = vmatpush1.msra.mxu0 0.0
    %973 = vmatprep.subr.mxu0 0.0
    %974 = vmatpush1.msra.mxu0 0.0
    %975 = vmatprep.subr.mxu0 0.0
    %976 = vmatpush1.msra.mxu0 0.0
    %977 = vmatprep.subr.mxu0 0.0
    %978 = vmatpush1.msra.mxu0 0.0
    %979 = vmatprep.subr.mxu0 0.0
    %980 = vmatpush1.msra.mxu0 0.0
    %981 = vmatprep.subr.mxu0 0.0
    %982 = vmatpush1.msra.mxu0 0.0
    %983 = vmatprep.subr.mxu0 0.0
    %984 = vmatpush1.msra.mxu0 0.0
    %985 = vmatprep.subr.mxu0 0.0
    %986 = vmatpush1.msra.mxu0 0.0
    %987 = vmatprep.subr.mxu0 0.0
    %988 = vmatpush1.msra.mxu0 0.0
    %989 = vmatprep.subr.mxu0 0.0
    %990 = vmatpush1.msra.mxu0 0.0
    %991 = vmatprep.subr.mxu0 0.0
    %992 = vmatpush1.msra.mxu0 0.0
    %993 = vmatprep.subr.mxu0 0.0
    %994 = vmatpush1.msra.mxu0 0.0
    %995 = vmatprep.subr.mxu0 0.0
    %996 = vmatpush1.msra.mxu0 0.0
    %997 = vmatprep.subr.mxu0 0.0
    %998 = vmatpush1.msra.mxu0 0.0
    %999 = vmatprep.subr.mxu0 0.0
    %1000 = vmatpush1.msra.mxu0 0.0
    %1001 = vmatprep.subr.mxu0 0.0
    %1002 = vmatpush1.msra.mxu0 0.0
    %1003 = vmatprep.subr.mxu0 0.0
    %1004 = vmatpush1.msra.mxu0 0.0
    %1005 = vmatprep.subr.mxu0 0.0
    %1006 = vmatpush1.msra.mxu0 0.0
    %1007 = vmatprep.subr.mxu0 0.0
    %1008 = vmatpush1.msra.mxu0 0.0
    %1009 = vmatprep.subr.mxu0 0.0
    %1010 = vmatpush1.msra.mxu0 0.0
    %1011 = vmatprep.subr.mxu0 0.0
    %1012 = vmatpush1.msra.mxu0 0.0
    %1013 = vmatprep.subr.mxu0 0.0
    %1014 = vmatpush1.msra.mxu0 0.0
    %1015 = vmatprep.mubr.f32.mxu0 0.0
    %1016 = vmatmul.mubr.f32.gmra.mrb[0].mxu0 %v946
    %v1017 = vpop.f32.mrb[0].mxu0
    %v1018 = vadd.f32 0.0, %v1017
    %v1019 = vpop.f32.mrb[0].mxu0
    %1020 = vdwg.mxu0
    %v1022 = vrot.slane %v44, 4
    %v1025 = vrot.slane %v47, 3
    %v1027 = vsel %vm86, %v1022, %v1025
    %v1029 = vlaneseq
    %v1030 = vshrl.u32 %v1029, 7
    %v1031 = vsub.s32 0, %v1030
    %v1032 = vrot.slane %v43, %v1031
    %v1034 = vmul.f32 %v1018, %v1032
    %v1035 = vadd.f32 %v1027, %v1034
    %vm1036 = vcmask 25600
    %1037 = vst.msk [vmem:[#allocation2] sm:$0x3] %vm1036, %v1035
    %v1038 = vmul.f32 %v653, %v483
    %v1039 = vmul.f32 %v654, %v488
    %v1040 = vmul.f32 %v655, %v493
    %v1041 = vmul.f32 %v656, %v498
    %v1042 = vmul.f32 %v657, %v611
    %v1043 = vmul.f32 %v658, %v616
    %v1044 = vmul.f32 %v659, %v621
    %v1045 = vmul.f32 %v660, %v626
    %v1046 = vsub.f32 %v1038, %v1042
    %v1047 = vsub.f32 %v1039, %v1043
    %v1048 = vsub.f32 %v1040, %v1044
    %v1049 = vsub.f32 %v1041, %v1045
    %v1050 = vmul.f32 %v653, %v611
    %v1051 = vmul.f32 %v654, %v616
    %v1052 = vmul.f32 %v655, %v621
    %v1053 = vmul.f32 %v656, %v626
    %v1054 = vmul.f32 %v657, %v483
    %v1055 = vmul.f32 %v658, %v488
    %v1056 = vmul.f32 %v659, %v493
    %v1057 = vmul.f32 %v660, %v498
    %v1058 = vadd.f32 %v1050, %v1054
    %v1059 = vadd.f32 %v1051, %v1055
    %v1060 = vadd.f32 %v1052, %v1056
    %v1061 = vadd.f32 %v1053, %v1057
    %s1062 = scalar_lea.vmem %s2, 4
    %v1063 = vld [vmem:[%s1062] sm:$0xf]
    %s1064 = scalar_lea.vmem %s3, 4
    %v1065 = vld [vmem:[%s1064] sm:$0xf]
    %v1067 = vsel %vm687, %v1065, 0
    %1069 = vmatprep.subr.mxu0 0.0
    %1070 = vmatpush1.msra.mxu0 %v1058
    %1071 = vmatprep.subr.mxu0 0.0
    %1072 = vmatpush1.msra.mxu0 %v1059
    %1073 = vmatprep.subr.mxu0 0.0
    %1074 = vmatpush1.msra.mxu0 %v1060
    %1075 = vmatprep.subr.mxu0 0.0
    %1076 = vmatpush1.msra.mxu0 %v1061
    %1077 = vmatprep.subr.mxu0 0.0
    %1078 = vmatpush1.msra.mxu0 0.0
    %1079 = vmatprep.subr.mxu0 0.0
    %1080 = vmatpush1.msra.mxu0 0.0
    %1081 = vmatprep.subr.mxu0 0.0
    %1082 = vmatpush1.msra.mxu0 0.0
    %1083 = vmatprep.subr.mxu0 0.0
    %1084 = vmatpush1.msra.mxu0 0.0
    %1085 = vmatprep.subr.mxu0 0.0
    %1086 = vmatpush1.msra.mxu0 0.0
    %1087 = vmatprep.subr.mxu0 0.0
    %1088 = vmatpush1.msra.mxu0 0.0
    %1089 = vmatprep.subr.mxu0 0.0
    %1090 = vmatpush1.msra.mxu0 0.0
    %1091 = vmatprep.subr.mxu0 0.0
    %1092 = vmatpush1.msra.mxu0 0.0
    %1093 = vmatprep.subr.mxu0 0.0
    %1094 = vmatpush1.msra.mxu0 0.0
    %1095 = vmatprep.subr.mxu0 0.0
    %1096 = vmatpush1.msra.mxu0 0.0
    %1097 = vmatprep.subr.mxu0 0.0
    %1098 = vmatpush1.msra.mxu0 0.0
    %1099 = vmatprep.subr.mxu0 0.0
    %1100 = vmatpush1.msra.mxu0 0.0
    %1101 = vmatprep.subr.mxu0 0.0
    %1102 = vmatpush1.msra.mxu0 0.0
    %1103 = vmatprep.subr.mxu0 0.0
    %1104 = vmatpush1.msra.mxu0 0.0
    %1105 = vmatprep.subr.mxu0 0.0
    %1106 = vmatpush1.msra.mxu0 0.0
    %1107 = vmatprep.subr.mxu0 0.0
    %1108 = vmatpush1.msra.mxu0 0.0
    %1109 = vmatprep.subr.mxu0 0.0
    %1110 = vmatpush1.msra.mxu0 0.0
    %1111 = vmatprep.subr.mxu0 0.0
    %1112 = vmatpush1.msra.mxu0 0.0
    %1113 = vmatprep.subr.mxu0 0.0
    %1114 = vmatpush1.msra.mxu0 0.0
    %1115 = vmatprep.subr.mxu0 0.0
    %1116 = vmatpush1.msra.mxu0 0.0
    %1117 = vmatprep.subr.mxu0 0.0
    %1118 = vmatpush1.msra.mxu0 0.0
    %1119 = vmatprep.subr.mxu0 0.0
    %1120 = vmatpush1.msra.mxu0 0.0
    %1121 = vmatprep.subr.mxu0 0.0
    %1122 = vmatpush1.msra.mxu0 0.0
    %1123 = vmatprep.subr.mxu0 0.0
    %1124 = vmatpush1.msra.mxu0 0.0
    %1125 = vmatprep.subr.mxu0 0.0
    %1126 = vmatpush1.msra.mxu0 0.0
    %1127 = vmatprep.subr.mxu0 0.0
    %1128 = vmatpush1.msra.mxu0 0.0
    %1129 = vmatprep.subr.mxu0 0.0
    %1130 = vmatpush1.msra.mxu0 0.0
    %1131 = vmatprep.subr.mxu0 0.0
    %1132 = vmatpush1.msra.mxu0 0.0
    %1133 = vmatprep.mubr.f32.mxu0 0.0
    %1134 = vmatmul.mubr.f32.gmra.mrb[0].mxu0 %v1067
    %v1135 = vpop.f32.mrb[0].mxu0
    %v1136 = vadd.f32 0.0, %v1135
    %v1137 = vpop.f32.mrb[0].mxu0
    %1138 = vdwg.mxu0
    %v1140 = vsel %vm687, %v1063, 0
    %1142 = vmatprep.subr.mxu0 0.0
    %1143 = vmatpush1.msra.mxu0 %v1046
    %1144 = vmatprep.subr.mxu0 0.0
    %1145 = vmatpush1.msra.mxu0 %v1047
    %1146 = vmatprep.subr.mxu0 0.0
    %1147 = vmatpush1.msra.mxu0 %v1048
    %1148 = vmatprep.subr.mxu0 0.0
    %1149 = vmatpush1.msra.mxu0 %v1049
    %1150 = vmatprep.subr.mxu0 0.0
    %1151 = vmatpush1.msra.mxu0 0.0
    %1152 = vmatprep.subr.mxu0 0.0
    %1153 = vmatpush1.msra.mxu0 0.0
    %1154 = vmatprep.subr.mxu0 0.0
    %1155 = vmatpush1.msra.mxu0 0.0
    %1156 = vmatprep.subr.mxu0 0.0
    %1157 = vmatpush1.msra.mxu0 0.0
    %1158 = vmatprep.subr.mxu0 0.0
    %1159 = vmatpush1.msra.mxu0 0.0
    %1160 = vmatprep.subr.mxu0 0.0
    %1161 = vmatpush1.msra.mxu0 0.0
    %1162 = vmatprep.subr.mxu0 0.0
    %1163 = vmatpush1.msra.mxu0 0.0
    %1164 = vmatprep.subr.mxu0 0.0
    %1165 = vmatpush1.msra.mxu0 0.0
    %1166 = vmatprep.subr.mxu0 0.0
    %1167 = vmatpush1.msra.mxu0 0.0
    %1168 = vmatprep.subr.mxu0 0.0
    %1169 = vmatpush1.msra.mxu0 0.0
    %1170 = vmatprep.subr.mxu0 0.0
    %1171 = vmatpush1.msra.mxu0 0.0
    %1172 = vmatprep.subr.mxu0 0.0
    %1173 = vmatpush1.msra.mxu0 0.0
    %1174 = vmatprep.subr.mxu0 0.0
    %1175 = vmatpush1.msra.mxu0 0.0
    %1176 = vmatprep.subr.mxu0 0.0
    %1177 = vmatpush1.msra.mxu0 0.0
    %1178 = vmatprep.subr.mxu0 0.0
    %1179 = vmatpush1.msra.mxu0 0.0
    %1180 = vmatprep.subr.mxu0 0.0
    %1181 = vmatpush1.msra.mxu0 0.0
    %1182 = vmatprep.subr.mxu0 0.0
    %1183 = vmatpush1.msra.mxu0 0.0
    %1184 = vmatprep.subr.mxu0 0.0
    %1185 = vmatpush1.msra.mxu0 0.0
    %1186 = vmatprep.subr.mxu0 0.0
    %1187 = vmatpush1.msra.mxu0 0.0
    %1188 = vmatprep.subr.mxu0 0.0
    %1189 = vmatpush1.msra.mxu0 0.0
    %1190 = vmatprep.subr.mxu0 0.0
    %1191 = vmatpush1.msra.mxu0 0.0
    %1192 = vmatprep.subr.mxu0 0.0
    %1193 = vmatpush1.msra.mxu0 0.0
    %1194 = vmatprep.subr.mxu0 0.0
    %1195 = vmatpush1.msra.mxu0 0.0
    %1196 = vmatprep.subr.mxu0 0.0
    %1197 = vmatpush1.msra.mxu0 0.0
    %1198 = vmatprep.subr.mxu0 0.0
    %1199 = vmatpush1.msra.mxu0 0.0
    %1200 = vmatprep.subr.mxu0 0.0
    %1201 = vmatpush1.msra.mxu0 0.0
    %1202 = vmatprep.subr.mxu0 0.0
    %1203 = vmatpush1.msra.mxu0 0.0
    %1204 = vmatprep.subr.mxu0 0.0
    %1205 = vmatpush1.msra.mxu0 0.0
    %1206 = vmatprep.mubr.f32.mxu0 0.0
    %1207 = vmatmul.mubr.f32.gmra.mrb[0].mxu0 %v1140
    %v1208 = vpop.f32.mrb[0].mxu0
    %v1209 = vadd.f32 %v1136, %v1208
    %v1210 = vpop.f32.mrb[0].mxu0
    %1211 = vdwg.mxu0
    %vm1212 = vcmp.gt.f32.partialorder %v1209, 0.0
    %v1213 = vmul.f32 %v1209, 0.01
    %v1214 = vsel %vm1212, %v1209, %v1213
    %s1215 = scalar_lea.vmem %s4, 24
    %v1216 = vld [vmem:[%s1215] sm:$0xff]
    %v1217 = vld [vmem:[%s1215 + $0x8] sm:$0xff]
    %v1218 = vld [vmem:[%s1215 + $0x10] sm:$0xf]
    %v1220 = vsel %vm840, %v1216, 0
    %v1223 = vsel %vm840, %v1217, 0
    %v1226 = vsel %vm840, %v1218, 0
    %v1229 = vsel %vm850, %v1214, 0
    %1231 = vmatprep.subr.mxu0 0.0
    %1232 = vmatpush1.msra.mxu0 %v1229
    %1233 = vmatprep.subr.mxu0 0.0
    %1234 = vmatpush1.msra.mxu0 0.0
    %1235 = vmatprep.subr.mxu0 0.0
    %1236 = vmatpush1.msra.mxu0 0.0
    %1237 = vmatprep.subr.mxu0 0.0
    %1238 = vmatpush1.msra.mxu0 0.0
    %1239 = vmatprep.subr.mxu0 0.0
    %1240 = vmatpush1.msra.mxu0 0.0
    %1241 = vmatprep.subr.mxu0 0.0
    %1242 = vmatpush1.msra.mxu0 0.0
    %1243 = vmatprep.subr.mxu0 0.0
    %1244 = vmatpush1.msra.mxu0 0.0
    %1245 = vmatprep.subr.mxu0 0.0
    %1246 = vmatpush1.msra.mxu0 0.0
    %1247 = vmatprep.subr.mxu0 0.0
    %1248 = vmatpush1.msra.mxu0 0.0
    %1249 = vmatprep.subr.mxu0 0.0
    %1250 = vmatpush1.msra.mxu0 0.0
    %1251 = vmatprep.subr.mxu0 0.0
    %1252 = vmatpush1.msra.mxu0 0.0
    %1253 = vmatprep.subr.mxu0 0.0
    %1254 = vmatpush1.msra.mxu0 0.0
    %1255 = vmatprep.subr.mxu0 0.0
    %1256 = vmatpush1.msra.mxu0 0.0
    %1257 = vmatprep.subr.mxu0 0.0
    %1258 = vmatpush1.msra.mxu0 0.0
    %1259 = vmatprep.subr.mxu0 0.0
    %1260 = vmatpush1.msra.mxu0 0.0
    %1261 = vmatprep.subr.mxu0 0.0
    %1262 = vmatpush1.msra.mxu0 0.0
    %1263 = vmatprep.subr.mxu0 0.0
    %1264 = vmatpush1.msra.mxu0 0.0
    %1265 = vmatprep.subr.mxu0 0.0
    %1266 = vmatpush1.msra.mxu0 0.0
    %1267 = vmatprep.subr.mxu0 0.0
    %1268 = vmatpush1.msra.mxu0 0.0
    %1269 = vmatprep.subr.mxu0 0.0
    %1270 = vmatpush1.msra.mxu0 0.0
    %1271 = vmatprep.subr.mxu0 0.0
    %1272 = vmatpush1.msra.mxu0 0.0
    %1273 = vmatprep.subr.mxu0 0.0
    %1274 = vmatpush1.msra.mxu0 0.0
    %1275 = vmatprep.subr.mxu0 0.0
    %1276 = vmatpush1.msra.mxu0 0.0
    %1277 = vmatprep.subr.mxu0 0.0
    %1278 = vmatpush1.msra.mxu0 0.0
    %1279 = vmatprep.subr.mxu0 0.0
    %1280 = vmatpush1.msra.mxu0 0.0
    %1281 = vmatprep.subr.mxu0 0.0
    %1282 = vmatpush1.msra.mxu0 0.0
    %1283 = vmatprep.subr.mxu0 0.0
    %1284 = vmatpush1.msra.mxu0 0.0
    %1285 = vmatprep.subr.mxu0 0.0
    %1286 = vmatpush1.msra.mxu0 0.0
    %1287 = vmatprep.subr.mxu0 0.0
    %1288 = vmatpush1.msra.mxu0 0.0
    %1289 = vmatprep.subr.mxu0 0.0
    %1290 = vmatpush1.msra.mxu0 0.0
    %1291 = vmatprep.subr.mxu0 0.0
    %1292 = vmatpush1.msra.mxu0 0.0
    %1293 = vmatprep.subr.mxu0 0.0
    %1294 = vmatpush1.msra.mxu0 0.0
    %1295 = vmatprep.mubr.f32.mxu0 0.0
    %1296 = vmatmul.mubr.f32.gmra.mrb[0].mxu0 %v1220
    %v1297 = vpop.f32.mrb[0].mxu0
    %v1298 = vadd.f32 0.0, %v1297
    %v1299 = vpop.f32.mrb[0].mxu0
    %1300 = vmatprep.mubr.f32.mxu0 0.0
    %1301 = vmatmul.mubr.f32.gmra.mrb[0].mxu0 %v1223
    %v1302 = vpop.f32.mrb[0].mxu0
    %v1303 = vadd.f32 0.0, %v1302
    %v1304 = vpop.f32.mrb[0].mxu0
    %1305 = vmatprep.mubr.f32.mxu0 0.0
    %1306 = vmatmul.mubr.f32.gmra.mrb[0].mxu0 %v1226
    %v1307 = vpop.f32.mrb[0].mxu0
    %v1308 = vadd.f32 0.0, %v1307
    %v1309 = vpop.f32.mrb[0].mxu0
    %1310 = vdwg.mxu0
    %vm1311 = vcmp.gt.f32.partialorder %v1298, 0.0
    %vm1312 = vcmp.gt.f32.partialorder %v1303, 0.0
    %vm1313 = vcmp.gt.f32.partialorder %v1308, 0.0
    %v1314 = vmul.f32 %v1298, 0.01
    %v1315 = vmul.f32 %v1303, 0.01
    %v1316 = vmul.f32 %v1308, 0.01
    %v1317 = vsel %vm1311, %v1298, %v1314
    %v1318 = vsel %vm1312, %v1303, %v1315
    %v1319 = vsel %vm1313, %v1308, %v1316
    %s1320 = scalar_lea.vmem %s5, 2
    %v1321 = vld [vmem:[%s1320] sm:$0x3]
    %v1323 = vsel %vm944, %v1321, 0
    %v1326 = vsel %vm850, %v1319, 0
    %1328 = vmatprep.subr.mxu0 0.0
    %1329 = vmatpush1.msra.mxu0 %v1317
    %1330 = vmatprep.subr.mxu0 0.0
    %1331 = vmatpush1.msra.mxu0 %v1318
    %1332 = vmatprep.subr.mxu0 0.0
    %1333 = vmatpush1.msra.mxu0 %v1326
    %1334 = vmatprep.subr.mxu0 0.0
    %1335 = vmatpush1.msra.mxu0 0.0
    %1336 = vmatprep.subr.mxu0 0.0
    %1337 = vmatpush1.msra.mxu0 0.0
    %1338 = vmatprep.subr.mxu0 0.0
    %1339 = vmatpush1.msra.mxu0 0.0
    %1340 = vmatprep.subr.mxu0 0.0
    %1341 = vmatpush1.msra.mxu0 0.0
    %1342 = vmatprep.subr.mxu0 0.0
    %1343 = vmatpush1.msra.mxu0 0.0
    %1344 = vmatprep.subr.mxu0 0.0
    %1345 = vmatpush1.msra.mxu0 0.0
    %1346 = vmatprep.subr.mxu0 0.0
    %1347 = vmatpush1.msra.mxu0 0.0
    %1348 = vmatprep.subr.mxu0 0.0
    %1349 = vmatpush1.msra.mxu0 0.0
    %1350 = vmatprep.subr.mxu0 0.0
    %1351 = vmatpush1.msra.mxu0 0.0
    %1352 = vmatprep.subr.mxu0 0.0
    %1353 = vmatpush1.msra.mxu0 0.0
    %1354 = vmatprep.subr.mxu0 0.0
    %1355 = vmatpush1.msra.mxu0 0.0
    %1356 = vmatprep.subr.mxu0 0.0
    %1357 = vmatpush1.msra.mxu0 0.0
    %1358 = vmatprep.subr.mxu0 0.0
    %1359 = vmatpush1.msra.mxu0 0.0
    %1360 = vmatprep.subr.mxu0 0.0
    %1361 = vmatpush1.msra.mxu0 0.0
    %1362 = vmatprep.subr.mxu0 0.0
    %1363 = vmatpush1.msra.mxu0 0.0
    %1364 = vmatprep.subr.mxu0 0.0
    %1365 = vmatpush1.msra.mxu0 0.0
    %1366 = vmatprep.subr.mxu0 0.0
    %1367 = vmatpush1.msra.mxu0 0.0
    %1368 = vmatprep.subr.mxu0 0.0
    %1369 = vmatpush1.msra.mxu0 0.0
    %1370 = vmatprep.subr.mxu0 0.0
    %1371 = vmatpush1.msra.mxu0 0.0
    %1372 = vmatprep.subr.mxu0 0.0
    %1373 = vmatpush1.msra.mxu0 0.0
    %1374 = vmatprep.subr.mxu0 0.0
    %1375 = vmatpush1.msra.mxu0 0.0
    %1376 = vmatprep.subr.mxu0 0.0
    %1377 = vmatpush1.msra.mxu0 0.0
    %1378 = vmatprep.subr.mxu0 0.0
    %1379 = vmatpush1.msra.mxu0 0.0
    %1380 = vmatprep.subr.mxu0 0.0
    %1381 = vmatpush1.msra.mxu0 0.0
    %1382 = vmatprep.subr.mxu0 0.0
    %1383 = vmatpush1.msra.mxu0 0.0
    %1384 = vmatprep.subr.mxu0 0.0
    %1385 = vmatpush1.msra.mxu0 0.0
    %1386 = vmatprep.subr.mxu0 0.0
    %1387 = vmatpush1.msra.mxu0 0.0
    %1388 = vmatprep.subr.mxu0 0.0
    %1389 = vmatpush1.msra.mxu0 0.0
    %1390 = vmatprep.subr.mxu0 0.0
    %1391 = vmatpush1.msra.mxu0 0.0
    %1392 = vmatprep.mubr.f32.mxu0 0.0
    %1393 = vmatmul.mubr.f32.gmra.mrb[0].mxu0 %v1323
    %v1394 = vpop.f32.mrb[0].mxu0
    %v1395 = vadd.f32 0.0, %v1394
    %v1396 = vpop.f32.mrb[0].mxu0
    %1397 = vdwg.mxu0
    %v1399 = vrot.slane %v368, 4
    %v1402 = vrot.slane %v371, 3
    %v1404 = vsel %vm86, %v1399, %v1402
    %v1405 = vmul.f32 %v1395, %v1032
    %v1406 = vadd.f32 %v1404, %v1405
    %s1407 = scalar_lea.vmem [#allocation2], 2
    %1408 = vst.msk [vmem:[%s1407] sm:$0x3] %vm1036, %v1406
    // Predicated region
    $region30: #{tpu_custom_call.1} parent=1 // pred_check
      _
    $region31: #{tpu_custom_call.1} parent=1 // pred_check_branch
      %1410 = sbr.rel (0) target = $region33
    $region32: #{tpu_custom_call.1} parent=1 // pred_region
      %s1412 = ssub.s32 64, 64
      %1413 = vsyncadd [#allocation3], %s1412
      %s1414 = sshll.u32 [#allocation2], 4
      %s1415 = int_to_ptr.vmem [resolvable:$true] %s1414
      %1420 = dma.vmem_to_hbm [thread:$0]  %s1415, 64, %s7, [#allocation3], 32, 32, 2
    $region33: #{tpu_custom_call.1} parent=1 // pred_fallthru
      _
    // Predicated region
    $region34: #{tpu_custom_call.1} parent=1 // pred_check
      _
    $region35: #{tpu_custom_call.1} parent=1 // pred_check_branch
      %1422 = sbr.rel (0) target = $region37
    $region36: #{tpu_custom_call.1} parent=1 // pred_region
      %1423 = dma.done [#allocation3], 64
    $region37: #{tpu_custom_call.1} parent=1 // pred_fallthru
      _
    %1424 = vsyncpa [#allocation3], 1

</llo_original>
